<compile_context>
chip_gen: v5e
topology: v5e:2x2
jax: 0.10.0
libtpu: 0.0.40
codegen_flags: <defaults>
</compile_context>

<pallas_src>
import jax
import jax.numpy as jnp
from jax.experimental import pallas as pl
from jax.experimental.pallas import tpu as pltpu

EPS = 1e-5  # PyTorch BatchNorm1d / LayerNorm default


def _round_up(x, m):
    return (x + m - 1) // m * m


# ----------------------------------------------------------------------------
# Fused kernel (grid over layers; x carried in VMEM scratch)
# ----------------------------------------------------------------------------
def make_detour_kernel(N, L, H, C, D, Dp, nlayer, fast):
    M = N * L          # tokens = BatchNorm "batch" (stats over nodes x seq)
    inv_m = 1.0 / M
    inv_d = 1.0 / D
    mm_dtype = jnp.bfloat16 if fast else jnp.float32

    def mm(a, b):
        return jnp.dot(a.astype(mm_dtype), b.astype(mm_dtype),
                       preferred_element_type=jnp.float32)

    def bmm(eq, a, b):
        return jnp.einsum(eq, a.astype(mm_dtype), b.astype(mm_dtype),
                          preferred_element_type=jnp.float32)

    def bn_fold(y, gb):
        # Training-mode BatchNorm1d over tokens, biased variance, one-pass
        # stats, folded to a per-channel scale/shift -> one mul + one add over
        # the full tile.  gb: (2, W) packed (gamma; beta), stats in f32.
        gamma = gb[0:1, :].astype(jnp.float32)
        beta = gb[1:2, :].astype(jnp.float32)
        mean = jnp.sum(y, axis=0, keepdims=True) * inv_m
        msq = jnp.sum(y * y, axis=0, keepdims=True) * inv_m
        var = jnp.maximum(msq - mean * mean, 0.0)
        scale = gamma * jax.lax.rsqrt(var + EPS)
        shift = beta - mean * scale
        return y * scale + shift

    def layer_norm(y, gb, chan_mask):
        # LayerNorm over the true D channels only; padded lanes are exact zeros
        # on entry and are re-zeroed on exit.
        gamma = gb[0:1, :].astype(jnp.float32)
        beta = gb[1:2, :].astype(jnp.float32)
        mean = jnp.sum(y, axis=-1, keepdims=True) * inv_d   # padded lanes = 0
        c = y - mean
        var = jnp.sum(c * c * chan_mask, axis=-1, keepdims=True) * inv_d
        return (c * jax.lax.rsqrt(var + EPS) * gamma + beta) * chan_mask

    def kernel(x_ref, mask_ref, w_in_ref, in_bn_ref,
               w_l_ref, bn_l_ref, ln_l_ref, o_ref, x_carry):
        l = pl.program_id(0)

        lane = jax.lax.broadcasted_iota(jnp.int32, (1, Dp), 1)
        chan_mask = (lane < D).astype(jnp.float32)

        # ---- layer 0 only: input projection + input BatchNorm ---------------
        @pl.when(l == 0)
        def _():
            x0 = mm(x_ref[...], w_in_ref[...])
            x_carry[...] = bn_fold(x0, in_bn_ref[...])

        x = x_carry[...]                       # (M, Dp), padded lanes == 0
        pad_mask = mask_ref[...]               # (N, L, L), multiplicative

        w_all = w_l_ref[...]                   # (Dp, 5*Dp)  [q|k|v|skip|ff]
        bn_all = bn_l_ref[...]                 # (2,  5*Dp)
        ln_gb = ln_l_ref[...]                  # (2,  Dp)    shared LayerNorm

        # ---- fused q|k|v|skip projection + one shared BN-stats pass ---------
        qkvs = bn_fold(mm(x, w_all[:, :4 * Dp]), bn_all[:, :4 * Dp])
        skip = qkvs[:, 3 * Dp:4 * Dp]

        # ---- multi-head attention (heads = C-wide lane sub-slices) ----------
        heads_out = []
        for h in range(H):                     # static; H is small
            qh = qkvs[:, 0 * Dp + h * C: 0 * Dp + (h + 1) * C].reshape(N, L, C)
            kh = qkvs[:, 1 * Dp + h * C: 1 * Dp + (h + 1) * C].reshape(N, L, C)
            vh = qkvs[:, 2 * Dp + h * C: 2 * Dp + (h + 1) * C].reshape(N, L, C)
            logits = bmm("nlc,nmc->nlm", qh, kh)
            logits = logits * pad_mask         # multiplicative mask, as in torch
            logits = logits - jnp.max(logits, axis=-1, keepdims=True)
            e = jnp.exp(logits)
            denom = jnp.sum(e, axis=-1, keepdims=True)
            if fast:
                p = e * pl.reciprocal(denom, approx=True)   # EUP slot, ~free
            else:
                p = e / denom
            heads_out.append(bmm("nlm,nmc->nlc", p, vh))
        if Dp > D:
            heads_out.append(jnp.zeros((N, L, Dp - D), jnp.float32))
        attn = jnp.concatenate(heads_out, axis=-1).reshape(M, Dp)

        out1 = layer_norm(attn + x, ln_gb, chan_mask)
        ff = bn_fold(mm(out1, w_all[:, 4 * Dp:]), bn_all[:, 4 * Dp:])
        out2 = layer_norm(out1 + ff, ln_gb, chan_mask)
        x_new = out2 + skip
        x_carry[...] = x_new                   # carry to next grid step

        # ---- last layer only: token-0 readout --------------------------------
        @pl.when(l == nlayer - 1)
        def _():
            o_ref[...] = x_new.reshape(N, L, Dp)[:, 0, :].astype(o_ref.dtype)

    return kernel


# ----------------------------------------------------------------------------
# Wrapper: D-padded (not per-head-padded) layout, fused per-layer weight pack,
# grid over layers streams one layer of weights at a time.
# ----------------------------------------------------------------------------
def detour_transformer_forward(x, pad_mask, params, heads, fast=False):
    N, L, f_in = x.shape
    D = params["w_in"].shape[1]
    H = heads
    assert D % H == 0
    C = D // H
    Dp = _round_up(D, 128)        # model width padded ONCE (lane-dense)
    Kp = _round_up(f_in, 128)     # lane-dense input feature width
    nlayer = len(params["layers"])
    M = N * L
    w_dtype = jnp.bfloat16 if fast else jnp.float32

    def pad_w(w, rows, cols):     # zero-pad a weight to (rows, cols)
        w = w.astype(jnp.float32)
        return jnp.pad(w, ((0, rows - w.shape[0]), (0, cols - w.shape[1]))).astype(w_dtype)

    def pad_gb(gb):               # pack (gamma, beta) -> (2, Dp); pads: g=1, b=0
        g, b = gb
        g = jnp.pad(g.astype(jnp.float32), (0, Dp - D), constant_values=1.0)
        b = jnp.pad(b.astype(jnp.float32), (0, Dp - D), constant_values=0.0)
        return jnp.stack([g, b])

    x_p = jnp.pad(x.reshape(M, f_in).astype(jnp.float32), ((0, 0), (0, Kp - f_in)))
    w_in_p = pad_w(params["w_in"], Kp, Dp)
    in_bn_p = pad_gb(params["in_bn"])

    w_list, bn_list, ln_list = [], [], []
    for layer in params["layers"]:
        ws, gs, bs = [], [], []
        for name in ("q", "k", "v", "skip", "ff"):     # [q|k|v|skip] fused, ff last
            ws.append(pad_w(layer["w_" + name], Dp, Dp))
            gb = pad_gb(layer["bn_" + name])
            gs.append(gb[0])
            bs.append(gb[1])
        w_list.append(jnp.concatenate(ws, axis=1))     # (Dp, 5*Dp)
        bn_list.append(jnp.stack([jnp.concatenate(gs), jnp.concatenate(bs)]))
        ln_list.append(pad_gb(layer["ln"]))
    w_layers = jnp.stack(w_list)     # (nlayer, Dp, 5*Dp): streamed per grid step
    bn_layers = jnp.stack(bn_list)   # (nlayer, 2, 5*Dp)
    ln_layers = jnp.stack(ln_list)   # (nlayer, 2, Dp)

    kernel = make_detour_kernel(N, L, H, C, D, Dp, nlayer, fast)

    out_p = pl.pallas_call(
        kernel,
        out_shape=jax.ShapeDtypeStruct((N, Dp), jnp.float32),
        grid_spec=pltpu.PrefetchScalarGridSpec(
            num_scalar_prefetch=0,
            grid=(nlayer,),
            in_specs=[
                pl.BlockSpec((M, Kp), lambda l: (0, 0)),          # x (layer 0)
                pl.BlockSpec((N, L, L), lambda l: (0, 0, 0)),     # pad mask
                pl.BlockSpec((Kp, Dp), lambda l: (0, 0)),         # w_in (layer 0)
                pl.BlockSpec((2, Dp), lambda l: (0, 0)),          # in_bn
                pl.BlockSpec((None, Dp, 5 * Dp), lambda l: (l, 0, 0)),  # layer weights
                pl.BlockSpec((None, 2, 5 * Dp), lambda l: (l, 0, 0)),   # layer BN g/b
                pl.BlockSpec((None, 2, Dp), lambda l: (l, 0, 0)),       # layer LN g/b
            ],
            out_specs=pl.BlockSpec((N, Dp), lambda l: (0, 0)),
            scratch_shapes=[pltpu.VMEM((M, Dp), jnp.float32)],    # carried activation
        ),
        compiler_params=pltpu.CompilerParams(
            # Layer axis carries state -> sequential.
            dimension_semantics=("arbitrary",),
            # Toy shapes: tiny.  When scaling, budget ~<=56 MiB on v7x (64 MiB
            # physical) and up to ~100 MiB on v5e/v6e (128 MiB physical).
            vmem_limit_bytes=32 * 1024 * 1024,
        ),
    )(x_p, pad_mask.astype(jnp.float32), w_in_p, in_bn_p,
      w_layers, bn_layers, ln_layers)

    return out_p[:, :D]     # strip lane padding -> (N, H*C)


# ----------------------------------------------------------------------------
# Deterministic parameter init (Linear biases omitted: cancelled by the BN
# mean subtraction that follows every Linear, so the forward is unchanged).
# BN/LN affine params are randomized (instead of 1/0) to exercise those paths.
# ----------------------------------------------------------------------------
def init_detour_params(key, in_channels, d_model, heads, nlayer):
    assert d_model % heads == 0

    def w_init(k, din, dout):
        return jax.random.normal(k, (din, dout), jnp.float32) * (1.0 / float(din) ** 0.5)

    def affine_init(k, d):
        k1, k2 = jax.random.split(k)
        gamma = 1.0 + 0.1 * jax.random.normal(k1, (d,), jnp.float32)
        beta = 0.1 * jax.random.normal(k2, (d,), jnp.float32)
        return gamma, beta

    params = {}
    key, k1, k2 = jax.random.split(key, 3)
    params["w_in"] = w_init(k1, in_channels, d_model)
    params["in_bn"] = affine_init(k2, d_model)
    layers = []
    for _ in range(nlayer):
        layer = {}
        for name in ("q", "k", "v", "ff", "skip"):
            key, kw, kb = jax.random.split(key, 3)
            layer["w_" + name] = w_init(kw, d_model, d_model)
            layer["bn_" + name] = affine_init(kb, d_model)
        key, kl = jax.random.split(key)
        layer["ln"] = affine_init(kl, d_model)
        layers.append(layer)
    params["layers"] = layers
    return params


# ----------------------------------------------------------------------------
# Pure-JAX reference of the same semantics (for the correctness check)
# ----------------------------------------------------------------------------
def _reference_forward(x, pad_mask, params, heads):
    PREC = jax.lax.Precision.HIGHEST
    N, L, _ = x.shape
    D = params["w_in"].shape[1]
    C = D // heads

    def bn(y, gb):
        g, b = gb
        y2 = y.reshape(N * L, D)
        mean = jnp.mean(y2, axis=0, keepdims=True)
        var = jnp.mean((y2 - mean) ** 2, axis=0, keepdims=True)
        y2 = (y2 - mean) / jnp.sqrt(var + EPS) * g + b
        return y2.reshape(N, L, D)

    def ln(y, gb):
        g, b = gb
        mean = jnp.mean(y, axis=-1, keepdims=True)
        var = jnp.mean((y - mean) ** 2, axis=-1, keepdims=True)
        return (y - mean) / jnp.sqrt(var + EPS) * g + b

    x = jnp.einsum("nlf,fd->nld", x, params["w_in"], precision=PREC)
    x = bn(x, params["in_bn"])
    for layer in params["layers"]:
        q = bn(jnp.einsum("nld,de->nle", x, layer["w_q"], precision=PREC),
               layer["bn_q"]).reshape(N, L, heads, C)
        k = bn(jnp.einsum("nld,de->nle", x, layer["w_k"], precision=PREC),
               layer["bn_k"]).reshape(N, L, heads, C)
        v = bn(jnp.einsum("nld,de->nle", x, layer["w_v"], precision=PREC),
               layer["bn_v"]).reshape(N, L, heads, C)
        logits = jnp.einsum("nlhc,nmhc->nhlm", q, k, precision=PREC)
        logits = logits * pad_mask[:, None]
        p = jax.nn.softmax(logits, axis=-1)
        attn = jnp.einsum("nhlm,nmhc->nlhc", p, v, precision=PREC).reshape(N, L, D)
        out = ln(attn + x, layer["ln"])
        ff = bn(jnp.einsum("nld,de->nle", out, layer["w_ff"], precision=PREC),
                layer["bn_ff"])
        out = ln(out + ff, layer["ln"])
        skip = bn(jnp.einsum("nld,de->nle", x, layer["w_skip"], precision=PREC),
                  layer["bn_skip"])
        x = out + skip
    return x[:, 0]


if __name__ == "__main__":
    # Small shapes consistent with the module:
    #   node_num=4, seq_len=8, in_channels=16, out_channels=32, heads=2 (C=16),
    #   nlayer=2, concat=True, beta=False, root_weight=True, dropout=0.
    N, L = 4, 8
    in_channels, out_channels, heads, nlayer = 16, 32, 2, 2

    key = jax.random.PRNGKey(0)
    key, kx = jax.random.split(key)
    x = jax.random.normal(kx, (N, L, in_channels), dtype=jnp.float32)

    # Multiplicative key-padding mask (N, L, L), as consumed by the module
    # via `alpha * pad_mask[:, None]`.
    lengths = jnp.array([L, L - 2, L, L - 3], dtype=jnp.int32)
    key_valid = (jnp.arange(L)[None, :] < lengths[:, None]).astype(jnp.float32)
    pad_mask = jnp.broadcast_to(key_valid[:, None, :], (N, L, L))

    params = init_detour_params(key, in_channels, out_channels, heads, nlayer)
    ref = _reference_forward(x, pad_mask, params, heads)

    # Exact path (f32 MXU inputs): tight check against the f32 reference.
    out = detour_transformer_forward(x, pad_mask, params, heads, fast=False)
    out = jax.block_until_ready(out)
    assert out.shape == (N, out_channels)
    max_err = float(jnp.max(jnp.abs(out - ref)))
    assert jnp.allclose(out, ref, atol=2e-3, rtol=2e-3), f"f32 path max abs err {max_err}"

    # Fast path (bf16 MXU inputs + approx-reciprocal softmax, f32 stats):
    # looser sanity check (bf16 rounding over 2 layers).
    out_fast = detour_transformer_forward(x, pad_mask, params, heads, fast=True)
    out_fast = jax.block_until_ready(out_fast)
    err_fast = float(jnp.max(jnp.abs(out_fast - ref)))
    assert jnp.isfinite(err_fast) and err_fast < 0.25, f"bf16 path max abs err {err_fast}"

    print("KERNEL_OK")
</pallas_src>

<mosaic_0001>
module attributes {stable_mosaic.version = 11 : i64} {
  func.func @kernel(%arg0: i32, %arg1: memref<32x128xf32, #tpu.memory_space<vmem>>, %arg2: memref<4x8x8xf32, #tpu.memory_space<vmem>>, %arg3: memref<128x128xf32, #tpu.memory_space<vmem>>, %arg4: memref<2x128xf32, #tpu.memory_space<vmem>>, %arg5: memref<1x128x640xf32, #tpu.memory_space<vmem>>, %arg6: memref<1x2x640xf32, #tpu.memory_space<vmem>>, %arg7: memref<1x2x128xf32, #tpu.memory_space<vmem>>, %arg8: memref<4x128xf32, #tpu.memory_space<vmem>>, %arg9: memref<32x128xf32, #tpu.memory_space<vmem>>) attributes {dimension_semantics = [#tpu.dimension_semantics<arbitrary>], iteration_bounds = array<i64: 2>, scalar_prefetch = 0 : i64, scratch_operands = 1 : i64, tpu.core_type = #tpu.core_type<tc>, window_params = [{pipeline_mode = #tpu.pipeline_mode<synchronous>, transform_indices = @transform_0, window_bounds = array<i64: 32, 128>}, {pipeline_mode = #tpu.pipeline_mode<synchronous>, transform_indices = @transform_1, window_bounds = array<i64: 4, 8, 8>}, {pipeline_mode = #tpu.pipeline_mode<synchronous>, transform_indices = @transform_2, window_bounds = array<i64: 128, 128>}, {pipeline_mode = #tpu.pipeline_mode<synchronous>, transform_indices = @transform_3, window_bounds = array<i64: 2, 128>}, {transform_indices = @transform_4, window_bounds = array<i64: 1, 128, 640>}, {transform_indices = @transform_5, window_bounds = array<i64: 1, 2, 640>}, {transform_indices = @transform_6, window_bounds = array<i64: 1, 2, 128>}, {pipeline_mode = #tpu.pipeline_mode<synchronous>, transform_indices = @transform_7, window_bounds = array<i64: 4, 128>}]} {
    %0 = tpu.iota {dimensions = array<i32: 1>} : vector<1x128xi32>
    %c32_i32 = arith.constant 32 : i32
    %1 = vector.broadcast %c32_i32 : i32 to vector<1x128xi32>
    %2 = arith.cmpi slt, %0, %1 : vector<1x128xi32>
    %3 = arith.extui %2 : vector<1x128xi1> to vector<1x128xi32>
    %4 = arith.sitofp %3 : vector<1x128xi32> to vector<1x128xf32>
    %c0_i32 = arith.constant 0 : i32
    %5 = arith.cmpi eq, %arg0, %c0_i32 : i32
    %6 = arith.extui %5 : i1 to i32
    %c0_i32_0 = arith.constant 0 : i32
    %7 = arith.cmpi ne, %6, %c0_i32_0 : i32
    scf.if %7 {
      %c0_49 = arith.constant 0 : index
      %c0_50 = arith.constant 0 : index
      %171 = vector.load %arg1[%c0_49, %c0_50] : memref<32x128xf32, #tpu.memory_space<vmem>>, vector<32x128xf32>
      %c0_51 = arith.constant 0 : index
      %c0_52 = arith.constant 0 : index
      %172 = vector.load %arg3[%c0_51, %c0_52] : memref<128x128xf32, #tpu.memory_space<vmem>>, vector<128x128xf32>
      %cst_53 = arith.constant dense<0.000000e+00> : vector<32x128xf32>
      %173 = tpu.matmul %171, %172, %cst_53 {dimension_numbers = #tpu.dot_dimension_numbers<[1], [0], [0], [1], [0, 0, 1, 1], [], []>} : vector<32x128xf32>, vector<128x128xf32>, vector<32x128xf32> -> vector<32x128xf32>
      %c0_54 = arith.constant 0 : index
      %c0_55 = arith.constant 0 : index
      %174 = vector.load %arg4[%c0_54, %c0_55] : memref<2x128xf32, #tpu.memory_space<vmem>>, vector<2x128xf32>
      %175 = vector.extract_strided_slice %174 {offsets = [0, 0], sizes = [1, 128], strides = [1, 1]} : vector<2x128xf32> to vector<1x128xf32>
      %176 = vector.extract_strided_slice %174 {offsets = [1, 0], sizes = [1, 128], strides = [1, 1]} : vector<2x128xf32> to vector<1x128xf32>
      %cst_56 = arith.constant dense<0.000000e+00> : vector<128xf32>
      %177 = vector.multi_reduction <add>, %173, %cst_56 [0] : vector<32x128xf32> to vector<128xf32>
      %178 = vector.shape_cast %177 : vector<128xf32> to vector<1x128xf32>
      %cst_57 = arith.constant 3.125000e-02 : f32
      %179 = vector.broadcast %cst_57 : f32 to vector<1x128xf32>
      %180 = arith.mulf %178, %179 : vector<1x128xf32>
      %181 = arith.mulf %173, %173 : vector<32x128xf32>
      %cst_58 = arith.constant dense<0.000000e+00> : vector<128xf32>
      %182 = vector.multi_reduction <add>, %181, %cst_58 [0] : vector<32x128xf32> to vector<128xf32>
      %183 = vector.shape_cast %182 : vector<128xf32> to vector<1x128xf32>
      %cst_59 = arith.constant 3.125000e-02 : f32
      %184 = vector.broadcast %cst_59 : f32 to vector<1x128xf32>
      %185 = arith.mulf %183, %184 : vector<1x128xf32>
      %186 = arith.mulf %180, %180 : vector<1x128xf32>
      %187 = arith.subf %185, %186 : vector<1x128xf32>
      %cst_60 = arith.constant 0.000000e+00 : f32
      %188 = vector.broadcast %cst_60 : f32 to vector<1x128xf32>
      %189 = arith.maximumf %187, %188 : vector<1x128xf32>
      %cst_61 = arith.constant 9.99999974E-6 : f32
      %190 = vector.broadcast %cst_61 : f32 to vector<1x128xf32>
      %191 = arith.addf %189, %190 : vector<1x128xf32>
      %192 = math.rsqrt %191 : vector<1x128xf32>
      %193 = arith.mulf %175, %192 : vector<1x128xf32>
      %194 = arith.mulf %180, %193 : vector<1x128xf32>
      %195 = arith.subf %176, %194 : vector<1x128xf32>
      %196 = vector.broadcast %193 : vector<1x128xf32> to vector<32x128xf32>
      %197 = arith.mulf %173, %196 : vector<32x128xf32>
      %198 = vector.broadcast %195 : vector<1x128xf32> to vector<32x128xf32>
      %199 = arith.addf %197, %198 : vector<32x128xf32>
      %c0_62 = arith.constant 0 : index
      %c0_63 = arith.constant 0 : index
      %200 = vector.load %arg9[%c0_62, %c0_63] : memref<32x128xf32, #tpu.memory_space<vmem>>, vector<32x128xf32>
      tpu.vector_store %arg9[%c0_62, %c0_63], %199 {strides = array<i32>} : memref<32x128xf32, #tpu.memory_space<vmem>>, vector<32x128xf32>,
    } else {
    }
    %c0 = arith.constant 0 : index
    %c0_1 = arith.constant 0 : index
    %8 = vector.load %arg9[%c0, %c0_1] : memref<32x128xf32, #tpu.memory_space<vmem>>, vector<32x128xf32>
    %c0_2 = arith.constant 0 : index
    %c0_3 = arith.constant 0 : index
    %c0_4 = arith.constant 0 : index
    %9 = vector.load %arg2[%c0_2, %c0_3, %c0_4] : memref<4x8x8xf32, #tpu.memory_space<vmem>>, vector<4x8x8xf32>
    %c0_5 = arith.constant 0 : index
    %c0_6 = arith.constant 0 : index
    %c0_7 = arith.constant 0 : index
    %10 = vector.load %arg5[%c0_5, %c0_6, %c0_7] : memref<1x128x640xf32, #tpu.memory_space<vmem>>, vector<1x128x640xf32>
    %11 = vector.shape_cast %10 : vector<1x128x640xf32> to vector<128x640xf32>
    %c0_8 = arith.constant 0 : index
    %c0_9 = arith.constant 0 : index
    %c0_10 = arith.constant 0 : index
    %12 = vector.load %arg6[%c0_8, %c0_9, %c0_10] : memref<1x2x640xf32, #tpu.memory_space<vmem>>, vector<1x2x640xf32>
    %13 = vector.shape_cast %12 : vector<1x2x640xf32> to vector<2x640xf32>
    %c0_11 = arith.constant 0 : index
    %c0_12 = arith.constant 0 : index
    %c0_13 = arith.constant 0 : index
    %14 = vector.load %arg7[%c0_11, %c0_12, %c0_13] : memref<1x2x128xf32, #tpu.memory_space<vmem>>, vector<1x2x128xf32>
    %15 = vector.shape_cast %14 : vector<1x2x128xf32> to vector<2x128xf32>
    %16 = vector.extract_strided_slice %11 {offsets = [0, 0], sizes = [128, 512], strides = [1, 1]} : vector<128x640xf32> to vector<128x512xf32>
    %cst = arith.constant dense<0.000000e+00> : vector<32x512xf32>
    %17 = tpu.matmul %8, %16, %cst {dimension_numbers = #tpu.dot_dimension_numbers<[1], [0], [0], [1], [0, 0, 1, 1], [], []>} : vector<32x128xf32>, vector<128x512xf32>, vector<32x512xf32> -> vector<32x512xf32>
    %18 = vector.extract_strided_slice %13 {offsets = [0, 0], sizes = [2, 512], strides = [1, 1]} : vector<2x640xf32> to vector<2x512xf32>
    %19 = vector.extract_strided_slice %18 {offsets = [0, 0], sizes = [1, 512], strides = [1, 1]} : vector<2x512xf32> to vector<1x512xf32>
    %20 = vector.extract_strided_slice %18 {offsets = [1, 0], sizes = [1, 512], strides = [1, 1]} : vector<2x512xf32> to vector<1x512xf32>
    %cst_14 = arith.constant dense<0.000000e+00> : vector<512xf32>
    %21 = vector.multi_reduction <add>, %17, %cst_14 [0] : vector<32x512xf32> to vector<512xf32>
    %22 = vector.shape_cast %21 : vector<512xf32> to vector<1x512xf32>
    %cst_15 = arith.constant 3.125000e-02 : f32
    %23 = vector.broadcast %cst_15 : f32 to vector<1x512xf32>
    %24 = arith.mulf %22, %23 : vector<1x512xf32>
    %25 = arith.mulf %17, %17 : vector<32x512xf32>
    %cst_16 = arith.constant dense<0.000000e+00> : vector<512xf32>
    %26 = vector.multi_reduction <add>, %25, %cst_16 [0] : vector<32x512xf32> to vector<512xf32>
    %27 = vector.shape_cast %26 : vector<512xf32> to vector<1x512xf32>
    %cst_17 = arith.constant 3.125000e-02 : f32
    %28 = vector.broadcast %cst_17 : f32 to vector<1x512xf32>
    %29 = arith.mulf %27, %28 : vector<1x512xf32>
    %30 = arith.mulf %24, %24 : vector<1x512xf32>
    %31 = arith.subf %29, %30 : vector<1x512xf32>
    %cst_18 = arith.constant 0.000000e+00 : f32
    %32 = vector.broadcast %cst_18 : f32 to vector<1x512xf32>
    %33 = arith.maximumf %31, %32 : vector<1x512xf32>
    %cst_19 = arith.constant 9.99999974E-6 : f32
    %34 = vector.broadcast %cst_19 : f32 to vector<1x512xf32>
    %35 = arith.addf %33, %34 : vector<1x512xf32>
    %36 = math.rsqrt %35 : vector<1x512xf32>
    %37 = arith.mulf %19, %36 : vector<1x512xf32>
    %38 = arith.mulf %24, %37 : vector<1x512xf32>
    %39 = arith.subf %20, %38 : vector<1x512xf32>
    %40 = vector.broadcast %37 : vector<1x512xf32> to vector<32x512xf32>
    %41 = arith.mulf %17, %40 : vector<32x512xf32>
    %42 = vector.broadcast %39 : vector<1x512xf32> to vector<32x512xf32>
    %43 = arith.addf %41, %42 : vector<32x512xf32>
    %44 = vector.extract_strided_slice %43 {offsets = [0, 384], sizes = [32, 128], strides = [1, 1]} : vector<32x512xf32> to vector<32x128xf32>
    %45 = vector.extract_strided_slice %43 {offsets = [0, 0], sizes = [32, 16], strides = [1, 1]} : vector<32x512xf32> to vector<32x16xf32>
    %46 = vector.shape_cast %45 : vector<32x16xf32> to vector<4x8x16xf32>
    %47 = vector.extract_strided_slice %43 {offsets = [0, 128], sizes = [32, 16], strides = [1, 1]} : vector<32x512xf32> to vector<32x16xf32>
    %48 = vector.shape_cast %47 : vector<32x16xf32> to vector<4x8x16xf32>
    %49 = vector.extract_strided_slice %43 {offsets = [0, 256], sizes = [32, 16], strides = [1, 1]} : vector<32x512xf32> to vector<32x16xf32>
    %50 = vector.shape_cast %49 : vector<32x16xf32> to vector<4x8x16xf32>
    "tpu.trace_start"() <{level = 10 : i32, message = "nlc,nmc->nlm"}> : () -> ()
    %cst_20 = arith.constant dense<0.000000e+00> : vector<4x8x8xf32>
    %51 = tpu.matmul %46, %48, %cst_20 {dimension_numbers = #tpu.dot_dimension_numbers<[2], [2], [1], [1], [0, 0, 0, 1, 1, 1], [0], [0]>} : vector<4x8x16xf32>, vector<4x8x16xf32>, vector<4x8x8xf32> -> vector<4x8x8xf32>
    "tpu.trace_stop"() : () -> ()
    %52 = arith.mulf %51, %9 : vector<4x8x8xf32>
    %cst_21 = arith.constant dense<0xFF800000> : vector<4x8xf32>
    %53 = vector.multi_reduction <maximumf>, %52, %cst_21 [2] : vector<4x8x8xf32> to vector<4x8xf32>
    %54 = vector.shape_cast %53 : vector<4x8xf32> to vector<4x8x1xf32>
    %55 = vector.broadcast %54 : vector<4x8x1xf32> to vector<4x8x8xf32>
    %56 = arith.subf %52, %55 : vector<4x8x8xf32>
    %57 = math.exp %56 : vector<4x8x8xf32>
    %cst_22 = arith.constant dense<0.000000e+00> : vector<4x8xf32>
    %58 = vector.multi_reduction <add>, %57, %cst_22 [2] : vector<4x8x8xf32> to vector<4x8xf32>
    %59 = vector.shape_cast %58 : vector<4x8xf32> to vector<4x8x1xf32>
    %60 = vector.broadcast %59 : vector<4x8x1xf32> to vector<4x8x8xf32>
    %61 = arith.divf %57, %60 : vector<4x8x8xf32>
    "tpu.trace_start"() <{level = 10 : i32, message = "nlm,nmc->nlc"}> : () -> ()
    %cst_23 = arith.constant dense<0.000000e+00> : vector<4x8x16xf32>
    %62 = tpu.matmul %61, %50, %cst_23 {dimension_numbers = #tpu.dot_dimension_numbers<[2], [1], [1], [2], [0, 0, 0, 1, 1, 2], [0], [0]>} : vector<4x8x8xf32>, vector<4x8x16xf32>, vector<4x8x16xf32> -> vector<4x8x16xf32>
    "tpu.trace_stop"() : () -> ()
    %63 = vector.extract_strided_slice %43 {offsets = [0, 16], sizes = [32, 16], strides = [1, 1]} : vector<32x512xf32> to vector<32x16xf32>
    %64 = vector.shape_cast %63 : vector<32x16xf32> to vector<4x8x16xf32>
    %65 = vector.extract_strided_slice %43 {offsets = [0, 144], sizes = [32, 16], strides = [1, 1]} : vector<32x512xf32> to vector<32x16xf32>
    %66 = vector.shape_cast %65 : vector<32x16xf32> to vector<4x8x16xf32>
    %67 = vector.extract_strided_slice %43 {offsets = [0, 272], sizes = [32, 16], strides = [1, 1]} : vector<32x512xf32> to vector<32x16xf32>
    %68 = vector.shape_cast %67 : vector<32x16xf32> to vector<4x8x16xf32>
    "tpu.trace_start"() <{level = 10 : i32, message = "nlc,nmc->nlm"}> : () -> ()
    %cst_24 = arith.constant dense<0.000000e+00> : vector<4x8x8xf32>
    %69 = tpu.matmul %64, %66, %cst_24 {dimension_numbers = #tpu.dot_dimension_numbers<[2], [2], [1], [1], [0, 0, 0, 1, 1, 1], [0], [0]>} : vector<4x8x16xf32>, vector<4x8x16xf32>, vector<4x8x8xf32> -> vector<4x8x8xf32>
    "tpu.trace_stop"() : () -> ()
    %70 = arith.mulf %69, %9 : vector<4x8x8xf32>
    %cst_25 = arith.constant dense<0xFF800000> : vector<4x8xf32>
    %71 = vector.multi_reduction <maximumf>, %70, %cst_25 [2] : vector<4x8x8xf32> to vector<4x8xf32>
    %72 = vector.shape_cast %71 : vector<4x8xf32> to vector<4x8x1xf32>
    %73 = vector.broadcast %72 : vector<4x8x1xf32> to vector<4x8x8xf32>
    %74 = arith.subf %70, %73 : vector<4x8x8xf32>
    %75 = math.exp %74 : vector<4x8x8xf32>
    %cst_26 = arith.constant dense<0.000000e+00> : vector<4x8xf32>
    %76 = vector.multi_reduction <add>, %75, %cst_26 [2] : vector<4x8x8xf32> to vector<4x8xf32>
    %77 = vector.shape_cast %76 : vector<4x8xf32> to vector<4x8x1xf32>
    %78 = vector.broadcast %77 : vector<4x8x1xf32> to vector<4x8x8xf32>
    %79 = arith.divf %75, %78 : vector<4x8x8xf32>
    "tpu.trace_start"() <{level = 10 : i32, message = "nlm,nmc->nlc"}> : () -> ()
    %cst_27 = arith.constant dense<0.000000e+00> : vector<4x8x16xf32>
    %80 = tpu.matmul %79, %68, %cst_27 {dimension_numbers = #tpu.dot_dimension_numbers<[2], [1], [1], [2], [0, 0, 0, 1, 1, 2], [0], [0]>} : vector<4x8x8xf32>, vector<4x8x16xf32>, vector<4x8x16xf32> -> vector<4x8x16xf32>
    %cst_28 = arith.constant 0.000000e+00 : f32
    "tpu.trace_stop"() : () -> ()
    %81 = vector.broadcast %cst_28 : f32 to vector<4x8x96xf32>
    %82 = tpu.concatenate %62, %80, %81 in 2 : vector<4x8x16xf32>, vector<4x8x16xf32>, vector<4x8x96xf32> -> vector<4x8x128xf32>
    %83 = vector.shape_cast %82 : vector<4x8x128xf32> to vector<32x128xf32>
    %84 = arith.addf %83, %8 : vector<32x128xf32>
    %85 = vector.extract_strided_slice %15 {offsets = [0, 0], sizes = [1, 128], strides = [1, 1]} : vector<2x128xf32> to vector<1x128xf32>
    %86 = vector.extract_strided_slice %15 {offsets = [1, 0], sizes = [1, 128], strides = [1, 1]} : vector<2x128xf32> to vector<1x128xf32>
    %cst_29 = arith.constant dense<0.000000e+00> : vector<32xf32>
    %87 = vector.multi_reduction <add>, %84, %cst_29 [1] : vector<32x128xf32> to vector<32xf32>
    %88 = vector.shape_cast %87 : vector<32xf32> to vector<32x1xf32>
    %cst_30 = arith.constant 3.125000e-02 : f32
    %89 = vector.broadcast %cst_30 : f32 to vector<32x1xf32>
    %90 = arith.mulf %88, %89 : vector<32x1xf32>
    %91 = vector.broadcast %90 : vector<32x1xf32> to vector<32x128xf32>
    %92 = arith.subf %84, %91 : vector<32x128xf32>
    %93 = arith.mulf %92, %92 : vector<32x128xf32>
    %94 = vector.broadcast %4 : vector<1x128xf32> to vector<32x128xf32>
    %95 = arith.mulf %93, %94 : vector<32x128xf32>
    %cst_31 = arith.constant dense<0.000000e+00> : vector<32xf32>
    %96 = vector.multi_reduction <add>, %95, %cst_31 [1] : vector<32x128xf32> to vector<32xf32>
    %97 = vector.shape_cast %96 : vector<32xf32> to vector<32x1xf32>
    %cst_32 = arith.constant 3.125000e-02 : f32
    %98 = vector.broadcast %cst_32 : f32 to vector<32x1xf32>
    %99 = arith.mulf %97, %98 : vector<32x1xf32>
    %cst_33 = arith.constant 9.99999974E-6 : f32
    %100 = vector.broadcast %cst_33 : f32 to vector<32x1xf32>
    %101 = arith.addf %99, %100 : vector<32x1xf32>
    %102 = math.rsqrt %101 : vector<32x1xf32>
    %103 = vector.broadcast %102 : vector<32x1xf32> to vector<32x128xf32>
    %104 = arith.mulf %92, %103 : vector<32x128xf32>
    %105 = vector.broadcast %85 : vector<1x128xf32> to vector<32x128xf32>
    %106 = arith.mulf %104, %105 : vector<32x128xf32>
    %107 = vector.broadcast %86 : vector<1x128xf32> to vector<32x128xf32>
    %108 = arith.addf %106, %107 : vector<32x128xf32>
    %109 = vector.broadcast %4 : vector<1x128xf32> to vector<32x128xf32>
    %110 = arith.mulf %108, %109 : vector<32x128xf32>
    %111 = vector.extract_strided_slice %11 {offsets = [0, 512], sizes = [128, 128], strides = [1, 1]} : vector<128x640xf32> to vector<128x128xf32>
    %cst_34 = arith.constant dense<0.000000e+00> : vector<32x128xf32>
    %112 = tpu.matmul %110, %111, %cst_34 {dimension_numbers = #tpu.dot_dimension_numbers<[1], [0], [0], [1], [0, 0, 1, 1], [], []>} : vector<32x128xf32>, vector<128x128xf32>, vector<32x128xf32> -> vector<32x128xf32>
    %113 = vector.extract_strided_slice %13 {offsets = [0, 512], sizes = [2, 128], strides = [1, 1]} : vector<2x640xf32> to vector<2x128xf32>
    %114 = vector.extract_strided_slice %113 {offsets = [0, 0], sizes = [1, 128], strides = [1, 1]} : vector<2x128xf32> to vector<1x128xf32>
    %115 = vector.extract_strided_slice %113 {offsets = [1, 0], sizes = [1, 128], strides = [1, 1]} : vector<2x128xf32> to vector<1x128xf32>
    %cst_35 = arith.constant dense<0.000000e+00> : vector<128xf32>
    %116 = vector.multi_reduction <add>, %112, %cst_35 [0] : vector<32x128xf32> to vector<128xf32>
    %117 = vector.shape_cast %116 : vector<128xf32> to vector<1x128xf32>
    %cst_36 = arith.constant 3.125000e-02 : f32
    %118 = vector.broadcast %cst_36 : f32 to vector<1x128xf32>
    %119 = arith.mulf %117, %118 : vector<1x128xf32>
    %120 = arith.mulf %112, %112 : vector<32x128xf32>
    %cst_37 = arith.constant dense<0.000000e+00> : vector<128xf32>
    %121 = vector.multi_reduction <add>, %120, %cst_37 [0] : vector<32x128xf32> to vector<128xf32>
    %122 = vector.shape_cast %121 : vector<128xf32> to vector<1x128xf32>
    %cst_38 = arith.constant 3.125000e-02 : f32
    %123 = vector.broadcast %cst_38 : f32 to vector<1x128xf32>
    %124 = arith.mulf %122, %123 : vector<1x128xf32>
    %125 = arith.mulf %119, %119 : vector<1x128xf32>
    %126 = arith.subf %124, %125 : vector<1x128xf32>
    %cst_39 = arith.constant 0.000000e+00 : f32
    %127 = vector.broadcast %cst_39 : f32 to vector<1x128xf32>
    %128 = arith.maximumf %126, %127 : vector<1x128xf32>
    %cst_40 = arith.constant 9.99999974E-6 : f32
    %129 = vector.broadcast %cst_40 : f32 to vector<1x128xf32>
    %130 = arith.addf %128, %129 : vector<1x128xf32>
    %131 = math.rsqrt %130 : vector<1x128xf32>
    %132 = arith.mulf %114, %131 : vector<1x128xf32>
    %133 = arith.mulf %119, %132 : vector<1x128xf32>
    %134 = arith.subf %115, %133 : vector<1x128xf32>
    %135 = vector.broadcast %132 : vector<1x128xf32> to vector<32x128xf32>
    %136 = arith.mulf %112, %135 : vector<32x128xf32>
    %137 = vector.broadcast %134 : vector<1x128xf32> to vector<32x128xf32>
    %138 = arith.addf %136, %137 : vector<32x128xf32>
    %139 = arith.addf %110, %138 : vector<32x128xf32>
    %140 = vector.extract_strided_slice %15 {offsets = [0, 0], sizes = [1, 128], strides = [1, 1]} : vector<2x128xf32> to vector<1x128xf32>
    %141 = vector.extract_strided_slice %15 {offsets = [1, 0], sizes = [1, 128], strides = [1, 1]} : vector<2x128xf32> to vector<1x128xf32>
    %cst_41 = arith.constant dense<0.000000e+00> : vector<32xf32>
    %142 = vector.multi_reduction <add>, %139, %cst_41 [1] : vector<32x128xf32> to vector<32xf32>
    %143 = vector.shape_cast %142 : vector<32xf32> to vector<32x1xf32>
    %cst_42 = arith.constant 3.125000e-02 : f32
    %144 = vector.broadcast %cst_42 : f32 to vector<32x1xf32>
    %145 = arith.mulf %143, %144 : vector<32x1xf32>
    %146 = vector.broadcast %145 : vector<32x1xf32> to vector<32x128xf32>
    %147 = arith.subf %139, %146 : vector<32x128xf32>
    %148 = arith.mulf %147, %147 : vector<32x128xf32>
    %149 = vector.broadcast %4 : vector<1x128xf32> to vector<32x128xf32>
    %150 = arith.mulf %148, %149 : vector<32x128xf32>
    %cst_43 = arith.constant dense<0.000000e+00> : vector<32xf32>
    %151 = vector.multi_reduction <add>, %150, %cst_43 [1] : vector<32x128xf32> to vector<32xf32>
    %152 = vector.shape_cast %151 : vector<32xf32> to vector<32x1xf32>
    %cst_44 = arith.constant 3.125000e-02 : f32
    %153 = vector.broadcast %cst_44 : f32 to vector<32x1xf32>
    %154 = arith.mulf %152, %153 : vector<32x1xf32>
    %cst_45 = arith.constant 9.99999974E-6 : f32
    %155 = vector.broadcast %cst_45 : f32 to vector<32x1xf32>
    %156 = arith.addf %154, %155 : vector<32x1xf32>
    %157 = math.rsqrt %156 : vector<32x1xf32>
    %158 = vector.broadcast %157 : vector<32x1xf32> to vector<32x128xf32>
    %159 = arith.mulf %147, %158 : vector<32x128xf32>
    %160 = vector.broadcast %140 : vector<1x128xf32> to vector<32x128xf32>
    %161 = arith.mulf %159, %160 : vector<32x128xf32>
    %162 = vector.broadcast %141 : vector<1x128xf32> to vector<32x128xf32>
    %163 = arith.addf %161, %162 : vector<32x128xf32>
    %164 = vector.broadcast %4 : vector<1x128xf32> to vector<32x128xf32>
    %165 = arith.mulf %163, %164 : vector<32x128xf32>
    %166 = arith.addf %165, %44 : vector<32x128xf32>
    %c0_46 = arith.constant 0 : index
    %c0_47 = arith.constant 0 : index
    %167 = vector.load %arg9[%c0_46, %c0_47] : memref<32x128xf32, #tpu.memory_space<vmem>>, vector<32x128xf32>
    tpu.vector_store %arg9[%c0_46, %c0_47], %166 {strides = array<i32>} : memref<32x128xf32, #tpu.memory_space<vmem>>, vector<32x128xf32>,
    %c1_i32 = arith.constant 1 : i32
    %168 = arith.cmpi eq, %arg0, %c1_i32 : i32
    %169 = arith.extui %168 : i1 to i32
    %c0_i32_48 = arith.constant 0 : i32
    %170 = arith.cmpi ne, %169, %c0_i32_48 : i32
    scf.if %170 {
      %171 = vector.shape_cast %166 : vector<32x128xf32> to vector<4x8x128xf32>
      %172 = vector.extract_strided_slice %171 {offsets = [0, 0, 0], sizes = [4, 1, 128], strides = [1, 1, 1]} : vector<4x8x128xf32> to vector<4x1x128xf32>
      %173 = vector.shape_cast %172 : vector<4x1x128xf32> to vector<4x128xf32>
      %c0_49 = arith.constant 0 : index
      %c0_50 = arith.constant 0 : index
      %174 = vector.load %arg8[%c0_49, %c0_50] : memref<4x128xf32, #tpu.memory_space<vmem>>, vector<4x128xf32>
      tpu.vector_store %arg8[%c0_49, %c0_50], %173 {strides = array<i32>} : memref<4x128xf32, #tpu.memory_space<vmem>>, vector<4x128xf32>,
    } else {
    }
    return
  }
  func.func @transform_0(%arg0: i32) -> (i32, i32) {
    %c0_i32 = arith.constant 0 : i32
    %c0_i32_0 = arith.constant 0 : i32
    %c0_i32_1 = arith.constant 0 : i32
    return %c0_i32, %c0_i32_0 : i32, i32
  }
  func.func @transform_1(%arg0: i32) -> (i32, i32, i32) {
    %c0_i32 = arith.constant 0 : i32
    %c0_i32_0 = arith.constant 0 : i32
    %c0_i32_1 = arith.constant 0 : i32
    %c0_i32_2 = arith.constant 0 : i32
    return %c0_i32, %c0_i32_0, %c0_i32_1 : i32, i32, i32
  }
  func.func @transform_2(%arg0: i32) -> (i32, i32) {
    %c0_i32 = arith.constant 0 : i32
    %c0_i32_0 = arith.constant 0 : i32
    %c0_i32_1 = arith.constant 0 : i32
    return %c0_i32, %c0_i32_0 : i32, i32
  }
  func.func @transform_3(%arg0: i32) -> (i32, i32) {
    %c0_i32 = arith.constant 0 : i32
    %c0_i32_0 = arith.constant 0 : i32
    %c0_i32_1 = arith.constant 0 : i32
    return %c0_i32, %c0_i32_0 : i32, i32
  }
  func.func @transform_4(%arg0: i32) -> (i32, i32, i32) {
    %c0_i32 = arith.constant 0 : i32
    %c0_i32_0 = arith.constant 0 : i32
    %c0_i32_1 = arith.constant 0 : i32
    return %arg0, %c0_i32, %c0_i32_0 : i32, i32, i32
  }
  func.func @transform_5(%arg0: i32) -> (i32, i32, i32) {
    %c0_i32 = arith.constant 0 : i32
    %c0_i32_0 = arith.constant 0 : i32
    %c0_i32_1 = arith.constant 0 : i32
    return %arg0, %c0_i32, %c0_i32_0 : i32, i32, i32
  }
  func.func @transform_6(%arg0: i32) -> (i32, i32, i32) {
    %c0_i32 = arith.constant 0 : i32
    %c0_i32_0 = arith.constant 0 : i32
    %c0_i32_1 = arith.constant 0 : i32
    return %arg0, %c0_i32, %c0_i32_0 : i32, i32, i32
  }
  func.func @transform_7(%arg0: i32) -> (i32, i32) {
    %c0_i32 = arith.constant 0 : i32
    %c0_i32_0 = arith.constant 0 : i32
    %c0_i32_1 = arith.constant 0 : i32
    return %c0_i32, %c0_i32_0 : i32, i32
  }
}

</mosaic_0001>

<llo_original>
// kernel: tpu_custom_call.1
$region0: #{tpu_custom_call.1}
  #allocation0 [shape = 'u32[]', space=smem, size = 0x4, offset = 0x4, fixed_abs, tag = 'smem constant byte address 0x4 - core index']
  #allocation1 [shape = 'u32[72,128]{1,0:T(1,128)}', space=vmem, size = 0x9000, scoped, tag = 'internal scratch']
  #allocation2 [shape = 'f32[32,128]{1,0:T(8,128)}', space=vmem, size = 0x4000, scoped, tag = 'scratch operand']
  %s0 = inlined_call_operand.hbm [shape: f32[32,128], index: 0, kind: input, shape index: {}]
  %s1 = inlined_call_operand.hbm [shape: f32[4,8,8], index: 1, kind: input, shape index: {}]
  %s2 = inlined_call_operand.hbm [shape: f32[128,128], index: 2, kind: input, shape index: {}]
  %s3 = inlined_call_operand.hbm [shape: f32[2,128], index: 3, kind: input, shape index: {}]
  %s4 = inlined_call_operand.hbm [shape: f32[2,128,640], index: 4, kind: input, shape index: {}]
  %s5 = inlined_call_operand.hbm [shape: f32[2,2,640], index: 5, kind: input, shape index: {}]
  %s6 = inlined_call_operand.vmem [shape: f32[2,2,128], index: 6, kind: input, shape index: {}]
  %s7 = inlined_call_operand.hbm [shape: f32[4,128], index: 7, kind: output, shape index: {}]
  %s8 = sld [smem:[#allocation0]]
  $region93: #{tpu_custom_call.1} parent=0
    _
  %s10 = ssub.s32 1, %s8
  %s11 = scalar_select 0, %s10, %s8
  $region1: #{tpu_custom_call.1} parent=0
    #allocation3 [shape = 'u8[16384]{0}', space=vmem, size = 0x4000, scoped, tag = 'input window, operand 0, single buffered']
    #allocation4 [shape = 's32[2]{0}', space=sflag, size = 0x8, scoped, tag = 'scoped memory for tpu_custom_call.1']
    #allocation5 [shape = 's32[2]{0}', space=sflag, size = 0x8, scoped, tag = 'scoped memory for tpu_custom_call.1']
    #allocation6 [shape = 'u8[16384]{0}', space=vmem, size = 0x4000, scoped, tag = 'input window, operand 1, single buffered']
    #allocation7 [shape = 's32[1]{0}', space=sflag, size = 0x4, scoped, tag = 'scoped memory for tpu_custom_call.1']
    #allocation8 [shape = 'u8[65536]{0}', space=vmem, size = 0x10000, scoped, tag = 'input window, operand 2, single buffered']
    #allocation9 [shape = 'u8[1024]{0}', space=vmem, size = 0x400, scoped, tag = 'input window, operand 3, single buffered']
    #allocation10 [shape = 's32[1]{0}', space=sflag, size = 0x4, scoped, tag = 'scoped memory for tpu_custom_call.1']
    #allocation11 [shape = 'u8[655360]{0}', space=vmem, size = 0xa0000, scoped, tag = 'input window, operand 4']
    #allocation12 [shape = 'u8[10240]{0}', space=vmem, size = 0x2800, scoped, tag = 'input window, operand 5']
    #allocation13 [shape = 'u8[2048]{0}', space=vmem, size = 0x800, scoped, tag = 'output window, operand 0, single buffered']
    %12 = vsyncpa [#allocation4], 0
    %13 = vsyncpa [#allocation7], 0
    %14 = vsyncpa [#allocation10], 0
    %15 = vsyncpa [#allocation5], 0
    loop: start=0, step=1, limit=4
    $region2: #{tpu_custom_call.1} parent=1 // loop_pre_header
      _
    $region3: #{tpu_custom_call.1} parent=1 // loop_header
      %s17 = sphi 0, %s21
      %p18 = scmp.ge.s32.totalorder %s17, 4
      %s25 = sphi 0, %s25
      %s27 = sphi 0, %s25
      %s28 = sphi 0, %s27
      %s42 = sphi 0, %s28
      %s46 = sphi 0, %s46
      %s48 = sphi 0, %s46
      %s49 = sphi 0, %s48
      %s63 = sphi 0, %s49
      %s67 = sphi 0, %s67
      %s69 = sphi 0, %s67
      %s70 = sphi 0, %s69
      %s84 = sphi 0, %s70
      %s88 = sphi 0, %s88
      %s90 = sphi 0, %s88
      %s91 = sphi 0, %s90
      %s105 = sphi 0, %s91
      %s111 = sphi 0, %s113
      %s114 = sphi 0, %s111
      %s115 = sphi 0, %s114
      %s131 = sphi 0, %s115
      %s137 = sphi 0, %s139
      %s140 = sphi 0, %s137
      %s141 = sphi 0, %s140
      %s157 = sphi 0, %s141
      %s163 = sphi 0, %s165
      %s166 = sphi 0, %s163
      %s167 = sphi 0, %s166
      %s183 = sphi 0, %s167
      %s187 = sphi 0, %s187
      %s189 = sphi 0, %s187
      %s190 = sphi 0, %s189
      %s204 = sphi 0, %s190
    $region4: #{tpu_custom_call.1} parent=1 // loop_header_branch
      %20 = sbr.rel (%p18) target = $region8
    $region5: #{tpu_custom_call.1} parent=1 // loop_body
      %s22 = ssub.s32 %s17, 1
      %s23 = ssub.s32 %s17, 2
      %s24 = sadd.s32 %s17, 1
      %s26 = sadd.s32 %s25, 1
      %p29 = scmp.eq.s32.totalorder %s17, 1
      %p30 = scmp.ne.s32.totalorder %s25, %s27
      %p31 = scmp.eq.s32.totalorder %s17, 0
      %p32 = por %p30, %p31
      %p33 = scmp.ne.s32.totalorder %s25, %s27
      %p34 = scmp.eq.s32.totalorder %s22, 1
      %p35 = por %p33, %p34
      %p36 = scmp.ne.s32.totalorder %s27, %s28
      %p37 = scmp.eq.s32.totalorder %s22, 0
      %p38 = por %p36, %p37
      %p39 = scmp.ne.s32.totalorder %s27, %s28
      %p40 = scmp.eq.s32.totalorder %s23, 1
      %p41 = por %p39, %p40
      %p43 = scmp.ne.s32.totalorder %s28, %s42
      %p44 = scmp.eq.s32.totalorder %s23, 0
      %p45 = por %p43, %p44
      %s47 = sadd.s32 %s46, 1
      %p50 = scmp.eq.s32.totalorder %s17, 1
      %p51 = scmp.ne.s32.totalorder %s46, %s48
      %p52 = scmp.eq.s32.totalorder %s17, 0
      %p53 = por %p51, %p52
      %p54 = scmp.ne.s32.totalorder %s46, %s48
      %p55 = scmp.eq.s32.totalorder %s22, 1
      %p56 = por %p54, %p55
      %p57 = scmp.ne.s32.totalorder %s48, %s49
      %p58 = scmp.eq.s32.totalorder %s22, 0
      %p59 = por %p57, %p58
      %p60 = scmp.ne.s32.totalorder %s48, %s49
      %p61 = scmp.eq.s32.totalorder %s23, 1
      %p62 = por %p60, %p61
      %p64 = scmp.ne.s32.totalorder %s49, %s63
      %p65 = scmp.eq.s32.totalorder %s23, 0
      %p66 = por %p64, %p65
      %s68 = sadd.s32 %s67, 1
      %p71 = scmp.eq.s32.totalorder %s17, 1
      %p72 = scmp.ne.s32.totalorder %s67, %s69
      %p73 = scmp.eq.s32.totalorder %s17, 0
      %p74 = por %p72, %p73
      %p75 = scmp.ne.s32.totalorder %s67, %s69
      %p76 = scmp.eq.s32.totalorder %s22, 1
      %p77 = por %p75, %p76
      %p78 = scmp.ne.s32.totalorder %s69, %s70
      %p79 = scmp.eq.s32.totalorder %s22, 0
      %p80 = por %p78, %p79
      %p81 = scmp.ne.s32.totalorder %s69, %s70
      %p82 = scmp.eq.s32.totalorder %s23, 1
      %p83 = por %p81, %p82
      %p85 = scmp.ne.s32.totalorder %s70, %s84
      %p86 = scmp.eq.s32.totalorder %s23, 0
      %p87 = por %p85, %p86
      %s89 = sadd.s32 %s88, 1
      %p92 = scmp.eq.s32.totalorder %s17, 1
      %p93 = scmp.ne.s32.totalorder %s88, %s90
      %p94 = scmp.eq.s32.totalorder %s17, 0
      %p95 = por %p93, %p94
      %p96 = scmp.ne.s32.totalorder %s88, %s90
      %p97 = scmp.eq.s32.totalorder %s22, 1
      %p98 = por %p96, %p97
      %p99 = scmp.ne.s32.totalorder %s90, %s91
      %p100 = scmp.eq.s32.totalorder %s22, 0
      %p101 = por %p99, %p100
      %p102 = scmp.ne.s32.totalorder %s90, %s91
      %p103 = scmp.eq.s32.totalorder %s23, 1
      %p104 = por %p102, %p103
      %p106 = scmp.ne.s32.totalorder %s91, %s105
      %p107 = scmp.eq.s32.totalorder %s23, 0
      %p108 = por %p106, %p107
      %s109 = ssub.s32 %s17, %s24
      %p110 = scmp.eq.s32.totalorder %s109, 0
      %s112 = sadd.s32 %s111, 1
      %s113 = scalar_select %p110, %s111, %s112
      %p116 = pneg %p110
      %p117 = scmp.eq.s32.totalorder %s17, 1
      %p118 = por %p116, %p117
      %p119 = scmp.ne.s32.totalorder %s111, %s114
      %p120 = scmp.eq.s32.totalorder %s17, 0
      %p121 = por %p119, %p120
      %p122 = scmp.ne.s32.totalorder %s111, %s114
      %p123 = scmp.eq.s32.totalorder %s22, 1
      %p124 = por %p122, %p123
      %p125 = scmp.ne.s32.totalorder %s114, %s115
      %p126 = scmp.eq.s32.totalorder %s22, 0
      %p127 = por %p125, %p126
      %p128 = scmp.ne.s32.totalorder %s114, %s115
      %p129 = scmp.eq.s32.totalorder %s23, 1
      %p130 = por %p128, %p129
      %p132 = scmp.ne.s32.totalorder %s115, %s131
      %p133 = scmp.eq.s32.totalorder %s23, 0
      %p134 = por %p132, %p133
      %s135 = ssub.s32 %s17, %s24
      %p136 = scmp.eq.s32.totalorder %s135, 0
      %s138 = sadd.s32 %s137, 1
      %s139 = scalar_select %p136, %s137, %s138
      %p142 = pneg %p136
      %p143 = scmp.eq.s32.totalorder %s17, 1
      %p144 = por %p142, %p143
      %p145 = scmp.ne.s32.totalorder %s137, %s140
      %p146 = scmp.eq.s32.totalorder %s17, 0
      %p147 = por %p145, %p146
      %p148 = scmp.ne.s32.totalorder %s137, %s140
      %p149 = scmp.eq.s32.totalorder %s22, 1
      %p150 = por %p148, %p149
      %p151 = scmp.ne.s32.totalorder %s140, %s141
      %p152 = scmp.eq.s32.totalorder %s22, 0
      %p153 = por %p151, %p152
      %p154 = scmp.ne.s32.totalorder %s140, %s141
      %p155 = scmp.eq.s32.totalorder %s23, 1
      %p156 = por %p154, %p155
      %p158 = scmp.ne.s32.totalorder %s141, %s157
      %p159 = scmp.eq.s32.totalorder %s23, 0
      %p160 = por %p158, %p159
      %s161 = ssub.s32 %s17, %s24
      %p162 = scmp.eq.s32.totalorder %s161, 0
      %s164 = sadd.s32 %s163, 1
      %s165 = scalar_select %p162, %s163, %s164
      %p168 = pneg %p162
      %p169 = scmp.eq.s32.totalorder %s17, 1
      %p170 = por %p168, %p169
      %p171 = scmp.ne.s32.totalorder %s163, %s166
      %p172 = scmp.eq.s32.totalorder %s17, 0
      %p173 = por %p171, %p172
      %p174 = scmp.ne.s32.totalorder %s163, %s166
      %p175 = scmp.eq.s32.totalorder %s22, 1
      %p176 = por %p174, %p175
      %p177 = scmp.ne.s32.totalorder %s166, %s167
      %p178 = scmp.eq.s32.totalorder %s22, 0
      %p179 = por %p177, %p178
      %p180 = scmp.ne.s32.totalorder %s166, %s167
      %p181 = scmp.eq.s32.totalorder %s23, 1
      %p182 = por %p180, %p181
      %p184 = scmp.ne.s32.totalorder %s167, %s183
      %p185 = scmp.eq.s32.totalorder %s23, 0
      %p186 = por %p184, %p185
      %s188 = sadd.s32 %s187, 1
      %p191 = scmp.eq.s32.totalorder %s17, 1
      %p192 = scmp.ne.s32.totalorder %s187, %s189
      %p193 = scmp.eq.s32.totalorder %s17, 0
      %p194 = por %p192, %p193
      %p195 = scmp.ne.s32.totalorder %s187, %s189
      %p196 = scmp.eq.s32.totalorder %s22, 1
      %p197 = por %p195, %p196
      %p198 = scmp.ne.s32.totalorder %s189, %s190
      %p199 = scmp.eq.s32.totalorder %s22, 0
      %p200 = por %p198, %p199
      %p201 = scmp.ne.s32.totalorder %s189, %s190
      %p202 = scmp.eq.s32.totalorder %s23, 1
      %p203 = por %p201, %p202
      %p205 = scmp.ne.s32.totalorder %s190, %s204
      %p206 = scmp.eq.s32.totalorder %s23, 0
      %p207 = por %p205, %p206
      %p208 = scmp.le.s32.totalorder 1, %s17
      %p209 = scmp.lt.s32.totalorder %s17, 3
      %p210 = pnand %p208, %p209
      %p211 = pneg %p210
      // Predicated region
      $region9: #{tpu_custom_call.1} parent=5 // pred_check
        _
      $region10: #{tpu_custom_call.1} parent=5 // pred_check_branch
        %213 = sbr.rel (%p210) target = $region12
      $region11: #{tpu_custom_call.1} parent=5 // pred_region
        %s214 = ssub.s32 %s17, 1
        // Predicated region
        $region13: #{tpu_custom_call.1} parent=11 // pred_check
          %p215 = pneg %p38
        $region14: #{tpu_custom_call.1} parent=11 // pred_check_branch
          %217 = sbr.rel (%p215) target = $region16
        $region15: #{tpu_custom_call.1} parent=11 // pred_region
          %219 = vsyncadd [#allocation4], 0
          %s220 = sshll.u32 %s0, 4
          %s221 = int_to_ptr.hbm [resolvable:$true] %s220
          %s222 = sshll.u32 [#allocation3], 4
          %s223 = int_to_ptr.vmem [resolvable:$true] %s222
          %228 = dma.hbm_to_vmem [thread:$0]  %s221, 512, %s223, [#allocation4], 128, 128, 8
        $region16: #{tpu_custom_call.1} parent=11 // pred_fallthru
          _
        // Predicated region
        $region17: #{tpu_custom_call.1} parent=11 // pred_check
          %p229 = pneg %p59
        $region18: #{tpu_custom_call.1} parent=11 // pred_check_branch
          %231 = sbr.rel (%p229) target = $region20
        $region19: #{tpu_custom_call.1} parent=11 // pred_region
          %233 = vsyncadd [#allocation7], 0
          %s234 = sshll.u32 %s1, 4
          %s235 = int_to_ptr.hbm [resolvable:$true] %s234
          %s236 = sshll.u32 [#allocation6], 4
          %s237 = int_to_ptr.vmem [resolvable:$true] %s236
          %242 = dma.hbm_to_vmem [thread:$0]  %s235, 512, %s237, [#allocation7], 128, 128, 8
        $region20: #{tpu_custom_call.1} parent=11 // pred_fallthru
          _
        // Predicated region
        $region21: #{tpu_custom_call.1} parent=11 // pred_check
          %p243 = pneg %p80
        $region22: #{tpu_custom_call.1} parent=11 // pred_check_branch
          %245 = sbr.rel (%p243) target = $region24
        $region23: #{tpu_custom_call.1} parent=11 // pred_region
          %247 = vsyncadd [#allocation7], 0
          %s248 = sshll.u32 %s2, 4
          %s249 = int_to_ptr.hbm [resolvable:$true] %s248
          %s250 = sshll.u32 [#allocation8], 4
          %s251 = int_to_ptr.vmem [resolvable:$true] %s250
          %256 = dma.hbm_to_vmem [thread:$0]  %s249, 2048, %s251, [#allocation7], 128, 128, 8
        $region24: #{tpu_custom_call.1} parent=11 // pred_fallthru
          _
        // Predicated region
        $region25: #{tpu_custom_call.1} parent=11 // pred_check
          %p257 = pneg %p101
        $region26: #{tpu_custom_call.1} parent=11 // pred_check_branch
          %259 = sbr.rel (%p257) target = $region28
        $region27: #{tpu_custom_call.1} parent=11 // pred_region
          %261 = vsyncadd [#allocation10], 0
          %s263 = sshll.u32 %s3, 4
          %s264 = int_to_ptr.hbm [resolvable:$true] %s263
          %s265 = sshll.u32 [#allocation9], 4
          %s266 = int_to_ptr.vmem [resolvable:$true] %s265
          %268 = dma.hbm_to_vmem [thread:$0]  %s264, 32, %s266, [#allocation10]
        $region28: #{tpu_custom_call.1} parent=11 // pred_fallthru
          _
      $region12: #{tpu_custom_call.1} parent=5 // pred_fallthru
        _
      %p269 = scmp.lt.s32.totalorder %s17, 2
      // Predicated region
      $region29: #{tpu_custom_call.1} parent=5 // pred_check
        %p270 = pneg %p269
      $region30: #{tpu_custom_call.1} parent=5 // pred_check_branch
        %272 = sbr.rel (%p270) target = $region32
      $region31: #{tpu_custom_call.1} parent=5 // pred_region
        // Predicated region
        $region33: #{tpu_custom_call.1} parent=31 // pred_check
          %p273 = pneg %p121
        $region34: #{tpu_custom_call.1} parent=31 // pred_check_branch
          %275 = sbr.rel (%p273) target = $region36
        $region35: #{tpu_custom_call.1} parent=31 // pred_region
          %s276 = sand.u32 %s17, 1
          %s277 = scalar_lea.sflag [#allocation4], %s276
          %s278 = sand.u32 %s111, 1
          %s279 = smul.addr %s278, 640
          %s280 = scalar_lea.vmem [#allocation11], %s279
          %282 = vsyncadd %s277, 0
          %s283 = smul.addr %s17, 80
          %s284 = smul.addr %s283, 8
          %s285 = scalar_lea.hbm %s4, %s284
          %s286 = sshll.u32 %s285, 4
          %s287 = int_to_ptr.hbm [resolvable:$true] %s286
          %s288 = sshll.u32 %s280, 4
          %s289 = int_to_ptr.vmem [resolvable:$true] %s288
          %294 = dma.hbm_to_vmem [thread:$0]  %s287, 10240, %s289, %s277, 640, 640, 40
        $region36: #{tpu_custom_call.1} parent=31 // pred_fallthru
          _
        // Predicated region
        $region37: #{tpu_custom_call.1} parent=31 // pred_check
          %p295 = pneg %p147
        $region38: #{tpu_custom_call.1} parent=31 // pred_check_branch
          %297 = sbr.rel (%p295) target = $region40
        $region39: #{tpu_custom_call.1} parent=31 // pred_region
          %s298 = sand.u32 %s17, 1
          %s299 = scalar_lea.sflag [#allocation4], %s298
          %s300 = sand.u32 %s137, 1
          %s301 = smul.addr %s300, 10
          %s302 = scalar_lea.vmem [#allocation12], %s301
          %304 = vsyncadd %s299, 0
          %s305 = smul.addr %s17, 5
          %s306 = smul.addr %s305, 2
          %s307 = scalar_lea.hbm %s5, %s306
          %s309 = sshll.u32 %s307, 4
          %s310 = int_to_ptr.hbm [resolvable:$true] %s309
          %s311 = sshll.u32 %s302, 4
          %s312 = int_to_ptr.vmem [resolvable:$true] %s311
          %314 = dma.hbm_to_vmem [thread:$0]  %s310, 160, %s312, %s299
        $region40: #{tpu_custom_call.1} parent=31 // pred_fallthru
          _
        // Predicated region
        $region41: #{tpu_custom_call.1} parent=31 // pred_check
          %p315 = pneg %p173
        $region42: #{tpu_custom_call.1} parent=31 // pred_check_branch
          %317 = sbr.rel (%p315) target = $region44
        $region43: #{tpu_custom_call.1} parent=31 // pred_region
          %p318 = scmp.lt.s32.totalorder %s17, 1
          %s319 = scalar_select %p318, %s17, 1
          %s320 = smul.addr %s319, 2
          %s321 = scalar_lea.vmem %s6, %s320
        $region44: #{tpu_custom_call.1} parent=31 // pred_fallthru
          _
      $region32: #{tpu_custom_call.1} parent=5 // pred_fallthru
        _
      %p322 = scmp.le.s32.totalorder 1, %s17
      %p323 = scmp.lt.s32.totalorder %s17, 3
      %p324 = pnand %p322, %p323
      %p325 = pneg %p324
      // Predicated region
      $region45: #{tpu_custom_call.1} parent=5 // pred_check
        _
      $region46: #{tpu_custom_call.1} parent=5 // pred_check_branch
        %327 = sbr.rel (%p324) target = $region48
      $region47: #{tpu_custom_call.1} parent=5 // pred_region
        %s328 = ssub.s32 %s17, 1
        // Predicated region
        $region49: #{tpu_custom_call.1} parent=47 // pred_check
          %p329 = pneg %p38
        $region50: #{tpu_custom_call.1} parent=47 // pred_check_branch
          %331 = sbr.rel (%p329) target = $region52
        $region51: #{tpu_custom_call.1} parent=47 // pred_region
          %333 = dma.done [#allocation4], 512
        $region52: #{tpu_custom_call.1} parent=47 // pred_fallthru
          _
        // Predicated region
        $region53: #{tpu_custom_call.1} parent=47 // pred_check
          %p334 = pneg %p59
        $region54: #{tpu_custom_call.1} parent=47 // pred_check_branch
          %336 = sbr.rel (%p334) target = $region56
        $region55: #{tpu_custom_call.1} parent=47 // pred_region
          %338 = dma.done [#allocation7], 512
        $region56: #{tpu_custom_call.1} parent=47 // pred_fallthru
          _
        // Predicated region
        $region57: #{tpu_custom_call.1} parent=47 // pred_check
          %p339 = pneg %p80
        $region58: #{tpu_custom_call.1} parent=47 // pred_check_branch
          %341 = sbr.rel (%p339) target = $region60
        $region59: #{tpu_custom_call.1} parent=47 // pred_region
          %343 = dma.done [#allocation7], 2048
        $region60: #{tpu_custom_call.1} parent=47 // pred_fallthru
          _
        // Predicated region
        $region61: #{tpu_custom_call.1} parent=47 // pred_check
          %p344 = pneg %p101
        $region62: #{tpu_custom_call.1} parent=47 // pred_check_branch
          %346 = sbr.rel (%p344) target = $region64
        $region63: #{tpu_custom_call.1} parent=47 // pred_region
          %348 = dma.done [#allocation10], 32
        $region64: #{tpu_custom_call.1} parent=47 // pred_fallthru
          _
        %s349 = sand.u32 %s22, 1
        %s350 = scalar_lea.sflag [#allocation4], %s349
        %s351 = sand.u32 %s114, 1
        %s352 = smul.addr %s351, 640
        %s353 = scalar_lea.vmem [#allocation11], %s352
        // Predicated region
        $region65: #{tpu_custom_call.1} parent=47 // pred_check
          %p354 = pneg %p127
        $region66: #{tpu_custom_call.1} parent=47 // pred_check_branch
          %356 = sbr.rel (%p354) target = $region68
        $region67: #{tpu_custom_call.1} parent=47 // pred_region
          %358 = dma.done %s350, 10240
        $region68: #{tpu_custom_call.1} parent=47 // pred_fallthru
          _
        %s359 = sand.u32 %s22, 1
        %s360 = scalar_lea.sflag [#allocation4], %s359
        %s361 = sand.u32 %s140, 1
        %s362 = smul.addr %s361, 10
        %s363 = scalar_lea.vmem [#allocation12], %s362
        // Predicated region
        $region69: #{tpu_custom_call.1} parent=47 // pred_check
          %p364 = pneg %p153
        $region70: #{tpu_custom_call.1} parent=47 // pred_check_branch
          %366 = sbr.rel (%p364) target = $region72
        $region71: #{tpu_custom_call.1} parent=47 // pred_region
          %368 = dma.done %s360, 160
        $region72: #{tpu_custom_call.1} parent=47 // pred_fallthru
          _
        %p369 = pneg %p38
        %p370 = pneg %p35
        %p371 = pneg %p59
        %p372 = pneg %p56
        %p373 = pneg %p80
        %p374 = pneg %p77
        %p375 = pneg %p101
        %p376 = pneg %p98
        %s377 = sand.u32 %s22, 1
        %s378 = scalar_lea.sflag [#allocation4], %s377
        %s379 = sand.u32 %s114, 1
        %s380 = smul.addr %s379, 640
        %s381 = scalar_lea.vmem [#allocation11], %s380
        %p382 = pneg %p127
        %p383 = pneg %p124
        %s384 = sand.u32 %s22, 1
        %s385 = scalar_lea.sflag [#allocation4], %s384
        %s386 = sand.u32 %s140, 1
        %s387 = smul.addr %s386, 10
        %s388 = scalar_lea.vmem [#allocation12], %s387
        %p389 = pneg %p153
        %p390 = pneg %p150
        %p391 = scmp.lt.s32.totalorder %s22, 1
        %s392 = scalar_select %p391, %s22, 1
        %s393 = smul.addr %s392, 2
        %s394 = scalar_lea.vmem %s6, %s393
        %p395 = pneg %p179
        %p396 = pneg %p176
        %p397 = pneg %p200
        %p398 = pneg %p197
        %p399 = scmp.lt.s32.totalorder %s22, 1
        %s400 = scalar_select %p399, %s22, 1
        %s401 = smul.addr %s400, 2
        %s402 = scalar_lea.vmem %s6, %s401
        %v403 = vlaneseq
        %v404 = vand.u32 %v403, 127
        %vm405 = vcmp.lt.s32.totalorder %v404, 32
        %v406 = vsel %vm405, 1, 0
        %v407 = vcvt.s32.f32 %v406
        %p408 = scmp.eq.s32.totalorder %s22, 0
        // Predicated region
        $region73: #{tpu_custom_call.1} parent=47 // pred_check
          %p409 = pneg %p408
        $region74: #{tpu_custom_call.1} parent=47 // pred_check_branch
          %411 = sbr.rel (%p409) target = $region76
        $region75: #{tpu_custom_call.1} parent=47 // pred_region
          %v412 = vld [vmem:[#allocation3] sm:$0xff]
          %v413 = vld [vmem:[#allocation3 + $0x8] sm:$0xff]
          %v414 = vld [vmem:[#allocation3 + $0x10] sm:$0xff]
          %v415 = vld [vmem:[#allocation3 + $0x18] sm:$0xff]
          %v416 = vld [vmem:[#allocation8] sm:$0xff]
          %v417 = vld [vmem:[#allocation8 + $0x8] sm:$0xff]
          %v418 = vld [vmem:[#allocation8 + $0x10] sm:$0xff]
          %v419 = vld [vmem:[#allocation8 + $0x18] sm:$0xff]
          %v420 = vld [vmem:[#allocation8 + $0x20] sm:$0xff]
          %v421 = vld [vmem:[#allocation8 + $0x28] sm:$0xff]
          %v422 = vld [vmem:[#allocation8 + $0x30] sm:$0xff]
          %v423 = vld [vmem:[#allocation8 + $0x38] sm:$0xff]
          %v424 = vld [vmem:[#allocation8 + $0x40] sm:$0xff]
          %v425 = vld [vmem:[#allocation8 + $0x48] sm:$0xff]
          %v426 = vld [vmem:[#allocation8 + $0x50] sm:$0xff]
          %v427 = vld [vmem:[#allocation8 + $0x58] sm:$0xff]
          %v428 = vld [vmem:[#allocation8 + $0x60] sm:$0xff]
          %v429 = vld [vmem:[#allocation8 + $0x68] sm:$0xff]
          %v430 = vld [vmem:[#allocation8 + $0x70] sm:$0xff]
          %v431 = vld [vmem:[#allocation8 + $0x78] sm:$0xff]
          %432 = vmatpush.msra.mxu0 %v431
          %433 = vmatpush.msra.mxu0 %v430
          %434 = vmatpush.msra.mxu0 %v429
          %435 = vmatpush.msra.mxu0 %v428
          %436 = vmatpush.msra.mxu0 %v427
          %437 = vmatpush.msra.mxu0 %v426
          %438 = vmatpush.msra.mxu0 %v425
          %439 = vmatpush.msra.mxu0 %v424
          %440 = vmatpush.msra.mxu0 %v423
          %441 = vmatpush.msra.mxu0 %v422
          %442 = vmatpush.msra.mxu0 %v421
          %443 = vmatpush.msra.mxu0 %v420
          %444 = vmatpush.msra.mxu0 %v419
          %445 = vmatpush.msra.mxu0 %v418
          %446 = vmatpush.msra.mxu0 %v417
          %447 = vmatpush.msra.mxu0 %v416
          %448 = vmatmul.f32.gmra.mxu0 %v412
          %v449 = vpop.f32.mrf.mxu0
          %v450 = vadd.f32 0.0, %v449
          %451 = vmatmul.f32.gmra.mxu0 %v413
          %v452 = vpop.f32.mrf.mxu0
          %v453 = vadd.f32 0.0, %v452
          %454 = vmatmul.f32.gmra.mxu0 %v414
          %v455 = vpop.f32.mrf.mxu0
          %v456 = vadd.f32 0.0, %v455
          %457 = vmatmul.f32.gmra.mxu0 %v415
          %v458 = vpop.f32.mrf.mxu0
          %v459 = vadd.f32 0.0, %v458
          %460 = vdwg.mxu0
          %v461 = vld [vmem:[#allocation9] sm:$0x3]
          %v462 = vadd.f32 %v450, %v453
          %v463 = vadd.f32 %v462, %v456
          %v464 = vadd.f32 %v463, %v459
          %v465 = vrot.slane %v464, 4
          %v466 = vadd.f32 %v464, %v465
          %v467 = vrot.slane %v466, 2
          %v468 = vadd.f32 %v466, %v467
          %v469 = vrot.slane %v468, 1
          %v470 = vadd.f32 %v468, %v469
          %v471 = vmul.f32 %v470, 0.03125
          %v472 = vmul.f32 %v450, %v450
          %v473 = vmul.f32 %v453, %v453
          %v474 = vmul.f32 %v456, %v456
          %v475 = vmul.f32 %v459, %v459
          %v476 = vadd.f32 %v472, %v473
          %v477 = vadd.f32 %v476, %v474
          %v478 = vadd.f32 %v477, %v475
          %v479 = vrot.slane %v478, 4
          %v480 = vadd.f32 %v478, %v479
          %v481 = vrot.slane %v480, 2
          %v482 = vadd.f32 %v480, %v481
          %v483 = vrot.slane %v482, 1
          %v484 = vadd.f32 %v482, %v483
          %v485 = vmul.f32 %v484, 0.03125
          %v486 = vmul.f32 %v471, %v471
          %v487 = vsub.f32 %v485, %v486
          %v488 = vmax.f32 %v487, 0.0
          %v489 = vadd.f32 %v488, 1e-05
          %v490 = vrsqrt.pop %v489
          %v491 = vmul.f32 %v490, %v489
          %v492 = vmul.f32 %v491, %v490
          %v493 = vmul.f32 0.5, %v492
          %v494 = vsub.f32 1.5, %v493
          %v495 = vmul.f32 %v490, %v494
          %vm496 = vweird.f32 %v489
          %vm497 = vweird.f32 %v490
          %vm498 = vmor %vm496, %vm497
          %v499 = vsel %vm498, %v490, %v495
          %v500 = vmul.f32 %v461, %v499
          %v501 = vmul.f32 %v471, %v500
          %v503 = vrot.slane %v501, 7
          %v505 = vsub.f32 %v461, %v503
          %v506 = vperm.slane %v500, 0
          %v507 = vmul.f32 %v450, %v506
          %v508 = vmul.f32 %v453, %v506
          %v509 = vmul.f32 %v456, %v506
          %v510 = vmul.f32 %v459, %v506
          %v511 = vperm.slane %v505, 1
          %v512 = vadd.f32 %v507, %v511
          %v513 = vadd.f32 %v508, %v511
          %v514 = vadd.f32 %v509, %v511
          %v515 = vadd.f32 %v510, %v511
          %516 = vst [vmem:[#allocation2] sm:$0xff] %v512
          %517 = vst [vmem:[#allocation2 + $0x8] sm:$0xff] %v513
          %518 = vst [vmem:[#allocation2 + $0x10] sm:$0xff] %v514
          %519 = vst [vmem:[#allocation2 + $0x18] sm:$0xff] %v515
        $region76: #{tpu_custom_call.1} parent=47 // pred_fallthru
          _
        %v520 = vld [vmem:[#allocation2] sm:$0xff]
        %v521 = vld [vmem:[#allocation2 + $0x8] sm:$0xff]
        %v522 = vld [vmem:[#allocation2 + $0x10] sm:$0xff]
        %v523 = vld [vmem:[#allocation2 + $0x18] sm:$0xff]
        %v524 = vld [vmem:[#allocation6] sm:$0xff]
        %v525 = vld [vmem:[#allocation6 + $0x8] sm:$0xff]
        %v526 = vld [vmem:[#allocation6 + $0x10] sm:$0xff]
        %v527 = vld [vmem:[#allocation6 + $0x18] sm:$0xff]
        %v528 = vld [vmem:[%s353] sm:$0xff]
        %v529 = vld [vmem:[%s353 + $0x8] sm:$0xff]
        %v530 = vld [vmem:[%s353 + $0x10] sm:$0xff]
        %v531 = vld [vmem:[%s353 + $0x18] sm:$0xff]
        %v532 = vld [vmem:[%s353 + $0x20] sm:$0xff]
        %v533 = vld [vmem:[%s353 + $0x28] sm:$0xff]
        %v534 = vld [vmem:[%s353 + $0x30] sm:$0xff]
        %v535 = vld [vmem:[%s353 + $0x38] sm:$0xff]
        %v536 = vld [vmem:[%s353 + $0x40] sm:$0xff]
        %v537 = vld [vmem:[%s353 + $0x48] sm:$0xff]
        %v538 = vld [vmem:[%s353 + $0x50] sm:$0xff]
        %v539 = vld [vmem:[%s353 + $0x58] sm:$0xff]
        %v540 = vld [vmem:[%s353 + $0x60] sm:$0xff]
        %v541 = vld [vmem:[%s353 + $0x68] sm:$0xff]
        %v542 = vld [vmem:[%s353 + $0x70] sm:$0xff]
        %v543 = vld [vmem:[%s353 + $0x78] sm:$0xff]
        %v544 = vld [vmem:[%s353 + $0x80] sm:$0xff]
        %v545 = vld [vmem:[%s353 + $0x88] sm:$0xff]
        %v546 = vld [vmem:[%s353 + $0x90] sm:$0xff]
        %v547 = vld [vmem:[%s353 + $0x98] sm:$0xff]
        %v548 = vld [vmem:[%s353 + $0xa0] sm:$0xff]
        %v549 = vld [vmem:[%s353 + $0xa8] sm:$0xff]
        %v550 = vld [vmem:[%s353 + $0xb0] sm:$0xff]
        %v551 = vld [vmem:[%s353 + $0xb8] sm:$0xff]
        %v552 = vld [vmem:[%s353 + $0xc0] sm:$0xff]
        %v553 = vld [vmem:[%s353 + $0xc8] sm:$0xff]
        %v554 = vld [vmem:[%s353 + $0xd0] sm:$0xff]
        %v555 = vld [vmem:[%s353 + $0xd8] sm:$0xff]
        %v556 = vld [vmem:[%s353 + $0xe0] sm:$0xff]
        %v557 = vld [vmem:[%s353 + $0xe8] sm:$0xff]
        %v558 = vld [vmem:[%s353 + $0xf0] sm:$0xff]
        %v559 = vld [vmem:[%s353 + $0xf8] sm:$0xff]
        %v560 = vld [vmem:[%s353 + $0x100] sm:$0xff]
        %v561 = vld [vmem:[%s353 + $0x108] sm:$0xff]
        %v562 = vld [vmem:[%s353 + $0x110] sm:$0xff]
        %v563 = vld [vmem:[%s353 + $0x118] sm:$0xff]
        %v564 = vld [vmem:[%s353 + $0x120] sm:$0xff]
        %v565 = vld [vmem:[%s353 + $0x128] sm:$0xff]
        %v566 = vld [vmem:[%s353 + $0x130] sm:$0xff]
        %v567 = vld [vmem:[%s353 + $0x138] sm:$0xff]
        %v568 = vld [vmem:[%s353 + $0x140] sm:$0xff]
        %v569 = vld [vmem:[%s353 + $0x148] sm:$0xff]
        %v570 = vld [vmem:[%s353 + $0x150] sm:$0xff]
        %v571 = vld [vmem:[%s353 + $0x158] sm:$0xff]
        %v572 = vld [vmem:[%s353 + $0x160] sm:$0xff]
        %v573 = vld [vmem:[%s353 + $0x168] sm:$0xff]
        %v574 = vld [vmem:[%s353 + $0x170] sm:$0xff]
        %v575 = vld [vmem:[%s353 + $0x178] sm:$0xff]
        %v576 = vld [vmem:[%s353 + $0x180] sm:$0xff]
        %v577 = vld [vmem:[%s353 + $0x188] sm:$0xff]
        %v578 = vld [vmem:[%s353 + $0x190] sm:$0xff]
        %v579 = vld [vmem:[%s353 + $0x198] sm:$0xff]
        %v580 = vld [vmem:[%s353 + $0x1a0] sm:$0xff]
        %v581 = vld [vmem:[%s353 + $0x1a8] sm:$0xff]
        %v582 = vld [vmem:[%s353 + $0x1b0] sm:$0xff]
        %v583 = vld [vmem:[%s353 + $0x1b8] sm:$0xff]
        %v584 = vld [vmem:[%s353 + $0x1c0] sm:$0xff]
        %v585 = vld [vmem:[%s353 + $0x1c8] sm:$0xff]
        %v586 = vld [vmem:[%s353 + $0x1d0] sm:$0xff]
        %v587 = vld [vmem:[%s353 + $0x1d8] sm:$0xff]
        %v588 = vld [vmem:[%s353 + $0x1e0] sm:$0xff]
        %v589 = vld [vmem:[%s353 + $0x1e8] sm:$0xff]
        %v590 = vld [vmem:[%s353 + $0x1f0] sm:$0xff]
        %v591 = vld [vmem:[%s353 + $0x1f8] sm:$0xff]
        %v592 = vld [vmem:[%s353 + $0x200] sm:$0xff]
        %v593 = vld [vmem:[%s353 + $0x208] sm:$0xff]
        %v594 = vld [vmem:[%s353 + $0x210] sm:$0xff]
        %v595 = vld [vmem:[%s353 + $0x218] sm:$0xff]
        %v596 = vld [vmem:[%s353 + $0x220] sm:$0xff]
        %v597 = vld [vmem:[%s353 + $0x228] sm:$0xff]
        %v598 = vld [vmem:[%s353 + $0x230] sm:$0xff]
        %v599 = vld [vmem:[%s353 + $0x238] sm:$0xff]
        %v600 = vld [vmem:[%s353 + $0x240] sm:$0xff]
        %v601 = vld [vmem:[%s353 + $0x248] sm:$0xff]
        %v602 = vld [vmem:[%s353 + $0x250] sm:$0xff]
        %v603 = vld [vmem:[%s353 + $0x258] sm:$0xff]
        %v604 = vld [vmem:[%s353 + $0x260] sm:$0xff]
        %v605 = vld [vmem:[%s353 + $0x268] sm:$0xff]
        %v606 = vld [vmem:[%s353 + $0x270] sm:$0xff]
        %v607 = vld [vmem:[%s353 + $0x278] sm:$0xff]
        %v608 = vld [vmem:[%s363] sm:$0xff]
        %v609 = vld [vmem:[%s363 + $0x8] sm:$0x3]
        %v610 = vld [vmem:[%s402] sm:$0x3]
        %611 = vmatpush.msra.mxu0 %v603
        %612 = vmatpush.msra.mxu0 %v598
        %613 = vmatpush.msra.mxu0 %v593
        %614 = vmatpush.msra.mxu0 %v588
        %615 = vmatpush.msra.mxu0 %v583
        %616 = vmatpush.msra.mxu0 %v578
        %617 = vmatpush.msra.mxu0 %v573
        %618 = vmatpush.msra.mxu0 %v568
        %619 = vmatpush.msra.mxu0 %v563
        %620 = vmatpush.msra.mxu0 %v558
        %621 = vmatpush.msra.mxu0 %v553
        %622 = vmatpush.msra.mxu0 %v548
        %623 = vmatpush.msra.mxu0 %v543
        %624 = vmatpush.msra.mxu0 %v538
        %625 = vmatpush.msra.mxu0 %v533
        %626 = vmatpush.msra.mxu0 %v528
        %627 = vmatmul.f32.gmra.mxu0 %v520
        %v628 = vpop.f32.mrf.mxu0
        %v629 = vadd.f32 0.0, %v628
        %630 = vmatmul.f32.gmra.mxu0 %v521
        %v631 = vpop.f32.mrf.mxu0
        %v632 = vadd.f32 0.0, %v631
        %633 = vmatmul.f32.gmra.mxu0 %v522
        %v634 = vpop.f32.mrf.mxu0
        %v635 = vadd.f32 0.0, %v634
        %636 = vmatmul.f32.gmra.mxu0 %v523
        %v637 = vpop.f32.mrf.mxu0
        %v638 = vadd.f32 0.0, %v637
        %639 = vdwg.mxu0
        %640 = vmatpush.msra.mxu0 %v604
        %641 = vmatpush.msra.mxu0 %v599
        %642 = vmatpush.msra.mxu0 %v594
        %643 = vmatpush.msra.mxu0 %v589
        %644 = vmatpush.msra.mxu0 %v584
        %645 = vmatpush.msra.mxu0 %v579
        %646 = vmatpush.msra.mxu0 %v574
        %647 = vmatpush.msra.mxu0 %v569
        %648 = vmatpush.msra.mxu0 %v564
        %649 = vmatpush.msra.mxu0 %v559
        %650 = vmatpush.msra.mxu0 %v554
        %651 = vmatpush.msra.mxu0 %v549
        %652 = vmatpush.msra.mxu0 %v544
        %653 = vmatpush.msra.mxu0 %v539
        %654 = vmatpush.msra.mxu0 %v534
        %655 = vmatpush.msra.mxu0 %v529
        %656 = vmatmul.f32.gmra.mxu0 %v520
        %v657 = vpop.f32.mrf.mxu0
        %v658 = vadd.f32 0.0, %v657
        %659 = vmatmul.f32.gmra.mxu0 %v521
        %v660 = vpop.f32.mrf.mxu0
        %v661 = vadd.f32 0.0, %v660
        %662 = vmatmul.f32.gmra.mxu0 %v522
        %v663 = vpop.f32.mrf.mxu0
        %v664 = vadd.f32 0.0, %v663
        %665 = vmatmul.f32.gmra.mxu0 %v523
        %v666 = vpop.f32.mrf.mxu0
        %v667 = vadd.f32 0.0, %v666
        %668 = vdwg.mxu0
        %669 = vmatpush.msra.mxu0 %v605
        %670 = vmatpush.msra.mxu0 %v600
        %671 = vmatpush.msra.mxu0 %v595
        %672 = vmatpush.msra.mxu0 %v590
        %673 = vmatpush.msra.mxu0 %v585
        %674 = vmatpush.msra.mxu0 %v580
        %675 = vmatpush.msra.mxu0 %v575
        %676 = vmatpush.msra.mxu0 %v570
        %677 = vmatpush.msra.mxu0 %v565
        %678 = vmatpush.msra.mxu0 %v560
        %679 = vmatpush.msra.mxu0 %v555
        %680 = vmatpush.msra.mxu0 %v550
        %681 = vmatpush.msra.mxu0 %v545
        %682 = vmatpush.msra.mxu0 %v540
        %683 = vmatpush.msra.mxu0 %v535
        %684 = vmatpush.msra.mxu0 %v530
        %685 = vmatmul.f32.gmra.mxu0 %v520
        %v686 = vpop.f32.mrf.mxu0
        %v687 = vadd.f32 0.0, %v686
        %688 = vmatmul.f32.gmra.mxu0 %v521
        %v689 = vpop.f32.mrf.mxu0
        %v690 = vadd.f32 0.0, %v689
        %691 = vmatmul.f32.gmra.mxu0 %v522
        %v692 = vpop.f32.mrf.mxu0
        %v693 = vadd.f32 0.0, %v692
        %694 = vmatmul.f32.gmra.mxu0 %v523
        %v695 = vpop.f32.mrf.mxu0
        %v696 = vadd.f32 0.0, %v695
        %697 = vdwg.mxu0
        %698 = vmatpush.msra.mxu0 %v606
        %699 = vmatpush.msra.mxu0 %v601
        %700 = vmatpush.msra.mxu0 %v596
        %701 = vmatpush.msra.mxu0 %v591
        %702 = vmatpush.msra.mxu0 %v586
        %703 = vmatpush.msra.mxu0 %v581
        %704 = vmatpush.msra.mxu0 %v576
        %705 = vmatpush.msra.mxu0 %v571
        %706 = vmatpush.msra.mxu0 %v566
        %707 = vmatpush.msra.mxu0 %v561
        %708 = vmatpush.msra.mxu0 %v556
        %709 = vmatpush.msra.mxu0 %v551
        %710 = vmatpush.msra.mxu0 %v546
        %711 = vmatpush.msra.mxu0 %v541
        %712 = vmatpush.msra.mxu0 %v536
        %713 = vmatpush.msra.mxu0 %v531
        %714 = vmatmul.f32.gmra.mxu0 %v520
        %v715 = vpop.f32.mrf.mxu0
        %v716 = vadd.f32 0.0, %v715
        %717 = vmatmul.f32.gmra.mxu0 %v521
        %v718 = vpop.f32.mrf.mxu0
        %v719 = vadd.f32 0.0, %v718
        %720 = vmatmul.f32.gmra.mxu0 %v522
        %v721 = vpop.f32.mrf.mxu0
        %v722 = vadd.f32 0.0, %v721
        %723 = vmatmul.f32.gmra.mxu0 %v523
        %v724 = vpop.f32.mrf.mxu0
        %v725 = vadd.f32 0.0, %v724
        %726 = vdwg.mxu0
        %v727 = vadd.f32 %v629, %v632
        %v728 = vadd.f32 %v727, %v635
        %v729 = vadd.f32 %v728, %v638
        %v730 = vrot.slane %v729, 4
        %v731 = vadd.f32 %v729, %v730
        %v732 = vrot.slane %v731, 2
        %v733 = vadd.f32 %v731, %v732
        %v734 = vrot.slane %v733, 1
        %v735 = vadd.f32 %v733, %v734
        %v736 = vadd.f32 %v658, %v661
        %v737 = vadd.f32 %v736, %v664
        %v738 = vadd.f32 %v737, %v667
        %v739 = vrot.slane %v738, 4
        %v740 = vadd.f32 %v738, %v739
        %v741 = vrot.slane %v740, 2
        %v742 = vadd.f32 %v740, %v741
        %v743 = vrot.slane %v742, 1
        %v744 = vadd.f32 %v742, %v743
        %v745 = vadd.f32 %v687, %v690
        %v746 = vadd.f32 %v745, %v693
        %v747 = vadd.f32 %v746, %v696
        %v748 = vrot.slane %v747, 4
        %v749 = vadd.f32 %v747, %v748
        %v750 = vrot.slane %v749, 2
        %v751 = vadd.f32 %v749, %v750
        %v752 = vrot.slane %v751, 1
        %v753 = vadd.f32 %v751, %v752
        %v754 = vadd.f32 %v716, %v719
        %v755 = vadd.f32 %v754, %v722
        %v756 = vadd.f32 %v755, %v725
        %v757 = vrot.slane %v756, 4
        %v758 = vadd.f32 %v756, %v757
        %v759 = vrot.slane %v758, 2
        %v760 = vadd.f32 %v758, %v759
        %v761 = vrot.slane %v760, 1
        %v762 = vadd.f32 %v760, %v761
        %v763 = vmul.f32 %v735, 0.03125
        %v764 = vmul.f32 %v744, 0.03125
        %v765 = vmul.f32 %v753, 0.03125
        %v766 = vmul.f32 %v762, 0.03125
        %v767 = vmul.f32 %v629, %v629
        %v768 = vmul.f32 %v658, %v658
        %v769 = vmul.f32 %v687, %v687
        %v770 = vmul.f32 %v716, %v716
        %v771 = vmul.f32 %v632, %v632
        %v772 = vmul.f32 %v661, %v661
        %v773 = vmul.f32 %v690, %v690
        %v774 = vmul.f32 %v719, %v719
        %v775 = vmul.f32 %v635, %v635
        %v776 = vmul.f32 %v664, %v664
        %v777 = vmul.f32 %v693, %v693
        %v778 = vmul.f32 %v722, %v722
        %v779 = vmul.f32 %v638, %v638
        %v780 = vmul.f32 %v667, %v667
        %v781 = vmul.f32 %v696, %v696
        %v782 = vmul.f32 %v725, %v725
        %v783 = vadd.f32 %v767, %v771
        %v784 = vadd.f32 %v783, %v775
        %v785 = vadd.f32 %v784, %v779
        %v786 = vrot.slane %v785, 4
        %v787 = vadd.f32 %v785, %v786
        %v788 = vrot.slane %v787, 2
        %v789 = vadd.f32 %v787, %v788
        %v790 = vrot.slane %v789, 1
        %v791 = vadd.f32 %v789, %v790
        %v792 = vadd.f32 %v768, %v772
        %v793 = vadd.f32 %v792, %v776
        %v794 = vadd.f32 %v793, %v780
        %v795 = vrot.slane %v794, 4
        %v796 = vadd.f32 %v794, %v795
        %v797 = vrot.slane %v796, 2
        %v798 = vadd.f32 %v796, %v797
        %v799 = vrot.slane %v798, 1
        %v800 = vadd.f32 %v798, %v799
        %v801 = vadd.f32 %v769, %v773
        %v802 = vadd.f32 %v801, %v777
        %v803 = vadd.f32 %v802, %v781
        %v804 = vrot.slane %v803, 4
        %v805 = vadd.f32 %v803, %v804
        %v806 = vrot.slane %v805, 2
        %v807 = vadd.f32 %v805, %v806
        %v808 = vrot.slane %v807, 1
        %v809 = vadd.f32 %v807, %v808
        %v810 = vadd.f32 %v770, %v774
        %v811 = vadd.f32 %v810, %v778
        %v812 = vadd.f32 %v811, %v782
        %v813 = vrot.slane %v812, 4
        %v814 = vadd.f32 %v812, %v813
        %v815 = vrot.slane %v814, 2
        %v816 = vadd.f32 %v814, %v815
        %v817 = vrot.slane %v816, 1
        %v818 = vadd.f32 %v816, %v817
        %v819 = vmul.f32 %v791, 0.03125
        %v820 = vmul.f32 %v800, 0.03125
        %v821 = vmul.f32 %v809, 0.03125
        %v822 = vmul.f32 %v818, 0.03125
        %v823 = vmul.f32 %v763, %v763
        %v824 = vmul.f32 %v764, %v764
        %v825 = vmul.f32 %v765, %v765
        %v826 = vmul.f32 %v766, %v766
        %v827 = vsub.f32 %v819, %v823
        %v828 = vsub.f32 %v820, %v824
        %v829 = vsub.f32 %v821, %v825
        %v830 = vsub.f32 %v822, %v826
        %v831 = vmax.f32 %v827, 0.0
        %v832 = vmax.f32 %v828, 0.0
        %v833 = vmax.f32 %v829, 0.0
        %v834 = vmax.f32 %v830, 0.0
        %v835 = vadd.f32 %v831, 1e-05
        %v836 = vadd.f32 %v832, 1e-05
        %v837 = vadd.f32 %v833, 1e-05
        %v838 = vadd.f32 %v834, 1e-05
        %v839 = vrsqrt.pop %v835
        %v840 = vmul.f32 %v839, %v835
        %v841 = vmul.f32 %v840, %v839
        %v842 = vmul.f32 0.5, %v841
        %v843 = vsub.f32 1.5, %v842
        %v844 = vmul.f32 %v839, %v843
        %vm845 = vweird.f32 %v835
        %vm846 = vweird.f32 %v839
        %vm847 = vmor %vm845, %vm846
        %v848 = vsel %vm847, %v839, %v844
        %v849 = vrsqrt.pop %v836
        %v850 = vmul.f32 %v849, %v836
        %v851 = vmul.f32 %v850, %v849
        %v852 = vmul.f32 0.5, %v851
        %v853 = vsub.f32 1.5, %v852
        %v854 = vmul.f32 %v849, %v853
        %vm855 = vweird.f32 %v836
        %vm856 = vweird.f32 %v849
        %vm857 = vmor %vm855, %vm856
        %v858 = vsel %vm857, %v849, %v854
        %v859 = vrsqrt.pop %v837
        %v860 = vmul.f32 %v859, %v837
        %v861 = vmul.f32 %v860, %v859
        %v862 = vmul.f32 0.5, %v861
        %v863 = vsub.f32 1.5, %v862
        %v864 = vmul.f32 %v859, %v863
        %vm865 = vweird.f32 %v837
        %vm866 = vweird.f32 %v859
        %vm867 = vmor %vm865, %vm866
        %v868 = vsel %vm867, %v859, %v864
        %v869 = vrsqrt.pop %v838
        %v870 = vmul.f32 %v869, %v838
        %v871 = vmul.f32 %v870, %v869
        %v872 = vmul.f32 0.5, %v871
        %v873 = vsub.f32 1.5, %v872
        %v874 = vmul.f32 %v869, %v873
        %vm875 = vweird.f32 %v838
        %vm876 = vweird.f32 %v869
        %vm877 = vmor %vm875, %vm876
        %v878 = vsel %vm877, %v869, %v874
        %v883 = vrot.slane %v858, 6
        %v884 = vrot.slane %v868, 4
        %v885 = vrot.slane %v878, 2
        %vm886 = vcmask 1041408
        %v887 = vsel %vm886, %v848, %v883
        %vm888 = vcmask 1045508
        %v889 = vsel %vm888, %v884, %v885
        %vm890 = vcmask 1043456
        %v891 = vsel %vm890, %v887, %v889
        %v893 = vmul.f32 %v608, %v891
        %v895 = vperm.slane %v893, 0
        %v896 = vperm.slane %v893, 2
        %v897 = vperm.slane %v893, 4
        %v898 = vperm.slane %v893, 6
        %v903 = vmul.f32 %v763, %v895
        %v904 = vmul.f32 %v764, %v896
        %v905 = vmul.f32 %v765, %v897
        %v906 = vmul.f32 %v766, %v898
        %v911 = vrot.slane %v904, 6
        %v912 = vrot.slane %v905, 4
        %v913 = vrot.slane %v906, 2
        %v914 = vsel %vm886, %v903, %v911
        %v915 = vsel %vm888, %v912, %v913
        %v916 = vsel %vm890, %v914, %v915
        %v917 = vrot.slane %v916, 7
        %v919 = vsub.f32 %v608, %v917
        %v920 = vperm.slane %v895, 0
        %v921 = vperm.slane %v896, 0
        %v922 = vperm.slane %v897, 0
        %v923 = vperm.slane %v898, 0
        %v924 = vmul.f32 %v629, %v920
        %v925 = vmul.f32 %v658, %v921
        %v926 = vmul.f32 %v687, %v922
        %v927 = vmul.f32 %v716, %v923
        %v928 = vmul.f32 %v632, %v920
        %v929 = vmul.f32 %v661, %v921
        %v930 = vmul.f32 %v690, %v922
        %v931 = vmul.f32 %v719, %v923
        %v932 = vmul.f32 %v635, %v920
        %v933 = vmul.f32 %v664, %v921
        %v934 = vmul.f32 %v693, %v922
        %v935 = vmul.f32 %v722, %v923
        %v936 = vmul.f32 %v638, %v920
        %v937 = vmul.f32 %v667, %v921
        %v938 = vmul.f32 %v696, %v922
        %v939 = vmul.f32 %v725, %v923
        %v941 = vperm.slane %v919, 1
        %v942 = vperm.slane %v919, 3
        %v943 = vperm.slane %v919, 5
        %v944 = vperm.slane %v919, 7
        %v949 = vperm.slane %v941, 1
        %v950 = vperm.slane %v942, 1
        %v951 = vperm.slane %v943, 1
        %v952 = vperm.slane %v944, 1
        %v953 = vadd.f32 %v924, %v949
        %v954 = vadd.f32 %v925, %v950
        %v955 = vadd.f32 %v926, %v951
        %v956 = vadd.f32 %v927, %v952
        %v957 = vadd.f32 %v928, %v949
        %v958 = vadd.f32 %v929, %v950
        %v959 = vadd.f32 %v930, %v951
        %v960 = vadd.f32 %v931, %v952
        %v961 = vadd.f32 %v932, %v949
        %v962 = vadd.f32 %v933, %v950
        %v963 = vadd.f32 %v934, %v951
        %v964 = vadd.f32 %v935, %v952
        %v965 = vadd.f32 %v936, %v949
        %v966 = vadd.f32 %v937, %v950
        %v967 = vadd.f32 %v938, %v951
        %v968 = vadd.f32 %v939, %v952
        %vm969 = vcmask 130048
        %v971 = vsel %vm969, %v953, 0
        %v974 = vsel %vm969, %v954, 0
        %976 = vmatpush.xpose.msra.mxu0 0.0
        %977 = vmatpush.xpose.msra.mxu0 0.0
        %978 = vmatpush.xpose.msra.mxu0 0.0
        %979 = vmatpush.xpose.msra.mxu0 0.0
        %980 = vmatpush.xpose.msra.mxu0 0.0
        %981 = vmatpush.xpose.msra.mxu0 0.0
        %982 = vmatpush.xpose.msra.mxu0 0.0
        %983 = vmatpush.xpose.msra.mxu0 0.0
        %984 = vmatpush.xpose.msra.mxu0 0.0
        %985 = vmatpush.xpose.msra.mxu0 0.0
        %986 = vmatpush.xpose.msra.mxu0 0.0
        %987 = vmatpush.xpose.msra.mxu0 0.0
        %988 = vmatpush.xpose.msra.mxu0 0.0
        %989 = vmatpush.xpose.msra.mxu0 0.0
        %990 = vmatpush.xpose.msra.mxu0 0.0
        %991 = vmatpush.xpose.msra.mxu0 %v974
        %992 = vmatmul.f32.gmra.mxu0 %v971
        %v993 = vpop.f32.mrf.mxu0
        %v994 = vadd.f32 0.0, %v993
        %995 = vdwg.mxu0
        %v997 = vsel %vm969, %v957, 0
        %v1000 = vsel %vm969, %v958, 0
        %1002 = vmatpush.xpose.msra.mxu0 0.0
        %1003 = vmatpush.xpose.msra.mxu0 0.0
        %1004 = vmatpush.xpose.msra.mxu0 0.0
        %1005 = vmatpush.xpose.msra.mxu0 0.0
        %1006 = vmatpush.xpose.msra.mxu0 0.0
        %1007 = vmatpush.xpose.msra.mxu0 0.0
        %1008 = vmatpush.xpose.msra.mxu0 0.0
        %1009 = vmatpush.xpose.msra.mxu0 0.0
        %1010 = vmatpush.xpose.msra.mxu0 0.0
        %1011 = vmatpush.xpose.msra.mxu0 0.0
        %1012 = vmatpush.xpose.msra.mxu0 0.0
        %1013 = vmatpush.xpose.msra.mxu0 0.0
        %1014 = vmatpush.xpose.msra.mxu0 0.0
        %1015 = vmatpush.xpose.msra.mxu0 0.0
        %1016 = vmatpush.xpose.msra.mxu0 0.0
        %1017 = vmatpush.xpose.msra.mxu0 %v1000
        %1018 = vmatmul.f32.gmra.mxu0 %v997
        %v1019 = vpop.f32.mrf.mxu0
        %v1020 = vadd.f32 0.0, %v1019
        %1021 = vdwg.mxu0
        %v1023 = vsel %vm969, %v961, 0
        %v1026 = vsel %vm969, %v962, 0
        %1028 = vmatpush.xpose.msra.mxu0 0.0
        %1029 = vmatpush.xpose.msra.mxu0 0.0
        %1030 = vmatpush.xpose.msra.mxu0 0.0
        %1031 = vmatpush.xpose.msra.mxu0 0.0
        %1032 = vmatpush.xpose.msra.mxu0 0.0
        %1033 = vmatpush.xpose.msra.mxu0 0.0
        %1034 = vmatpush.xpose.msra.mxu0 0.0
        %1035 = vmatpush.xpose.msra.mxu0 0.0
        %1036 = vmatpush.xpose.msra.mxu0 0.0
        %1037 = vmatpush.xpose.msra.mxu0 0.0
        %1038 = vmatpush.xpose.msra.mxu0 0.0
        %1039 = vmatpush.xpose.msra.mxu0 0.0
        %1040 = vmatpush.xpose.msra.mxu0 0.0
        %1041 = vmatpush.xpose.msra.mxu0 0.0
        %1042 = vmatpush.xpose.msra.mxu0 0.0
        %1043 = vmatpush.xpose.msra.mxu0 %v1026
        %1044 = vmatmul.f32.gmra.mxu0 %v1023
        %v1045 = vpop.f32.mrf.mxu0
        %v1046 = vadd.f32 0.0, %v1045
        %1047 = vdwg.mxu0
        %v1049 = vsel %vm969, %v965, 0
        %v1052 = vsel %vm969, %v966, 0
        %1054 = vmatpush.xpose.msra.mxu0 0.0
        %1055 = vmatpush.xpose.msra.mxu0 0.0
        %1056 = vmatpush.xpose.msra.mxu0 0.0
        %1057 = vmatpush.xpose.msra.mxu0 0.0
        %1058 = vmatpush.xpose.msra.mxu0 0.0
        %1059 = vmatpush.xpose.msra.mxu0 0.0
        %1060 = vmatpush.xpose.msra.mxu0 0.0
        %1061 = vmatpush.xpose.msra.mxu0 0.0
        %1062 = vmatpush.xpose.msra.mxu0 0.0
        %1063 = vmatpush.xpose.msra.mxu0 0.0
        %1064 = vmatpush.xpose.msra.mxu0 0.0
        %1065 = vmatpush.xpose.msra.mxu0 0.0
        %1066 = vmatpush.xpose.msra.mxu0 0.0
        %1067 = vmatpush.xpose.msra.mxu0 0.0
        %1068 = vmatpush.xpose.msra.mxu0 0.0
        %1069 = vmatpush.xpose.msra.mxu0 %v1052
        %1070 = vmatmul.f32.gmra.mxu0 %v1049
        %v1071 = vpop.f32.mrf.mxu0
        %v1072 = vadd.f32 0.0, %v1071
        %1073 = vdwg.mxu0
        %v1074 = vmul.f32 %v994, %v524
        %v1075 = vmul.f32 %v1020, %v525
        %v1076 = vmul.f32 %v1046, %v526
        %v1077 = vmul.f32 %v1072, %v527
        %vm1078 = vcmask 64512
        %v1079 = vsel %vm1078, %v1074, -inf
        %1080 = vmax.xlane.f32.xlu0 %v1079
        %v1081 = vpop.xlane.xlu0 %1080
        %v1082 = vsel %vm1078, %v1075, -inf
        %1083 = vmax.xlane.f32.xlu0 %v1082
        %v1084 = vpop.xlane.xlu0 %1083
        %v1085 = vsel %vm1078, %v1076, -inf
        %1086 = vmax.xlane.f32.xlu0 %v1085
        %v1087 = vpop.xlane.xlu0 %1086
        %v1088 = vsel %vm1078, %v1077, -inf
        %1089 = vmax.xlane.f32.xlu0 %v1088
        %v1090 = vpop.xlane.xlu0 %1089
        %v1091 = vsub.f32 %v1074, %v1081
        %v1092 = vsub.f32 %v1075, %v1084
        %v1093 = vsub.f32 %v1076, %v1087
        %v1094 = vsub.f32 %v1077, %v1090
        %v1095 = vmul.f32 %v1091, 1.442695
        %v1096 = vpow.pop %v1095
        %v1097 = vmul.f32 %v1092, 1.442695
        %v1098 = vpow.pop %v1097
        %v1099 = vmul.f32 %v1093, 1.442695
        %v1100 = vpow.pop %v1099
        %v1101 = vmul.f32 %v1094, 1.442695
        %v1102 = vpow.pop %v1101
        %v1103 = vsel %vm1078, %v1096, 0.0
        %1104 = vadd.xlane.f32.xlu0 %v1103
        %v1105 = vpop.xlane.xlu0 %1104
        %v1106 = vsel %vm1078, %v1098, 0.0
        %1107 = vadd.xlane.f32.xlu0 %v1106
        %v1108 = vpop.xlane.xlu0 %1107
        %v1109 = vsel %vm1078, %v1100, 0.0
        %1110 = vadd.xlane.f32.xlu0 %v1109
        %v1111 = vpop.xlane.xlu0 %1110
        %v1112 = vsel %vm1078, %v1102, 0.0
        %1113 = vadd.xlane.f32.xlu0 %v1112
        %v1114 = vpop.xlane.xlu0 %1113
        %v1115 = vrcp.pop %v1105
        %v1116 = vmul.f32 %v1105, %v1115
        %v1117 = vsub.f32 1.0, %v1116
        %v1118 = vmul.f32 %v1115, %v1117
        %v1119 = vadd.f32 %v1115, %v1118
        %vm1120 = vweird.f32 %v1105
        %vm1121 = vweird.f32 %v1115
        %vm1122 = vmor %vm1120, %vm1121
        %v1123 = vsel %vm1122, %v1115, %v1119
        %v1124 = vand.u32 2147483647, %v1105
        %vm1125 = vcmp.eq.f32.partialorder %v1124, 8.507059e+37
        %v1126 = vand.u32 %v1105, 2147483648
        %v1127 = vor.u32 1.1754944e-38, %v1126
        %v1128 = vsel %vm1125, %v1127, %v1123
        %v1129 = vmul.f32 %v1096, %v1128
        %v1130 = vrcp.pop %v1108
        %v1131 = vmul.f32 %v1108, %v1130
        %v1132 = vsub.f32 1.0, %v1131
        %v1133 = vmul.f32 %v1130, %v1132
        %v1134 = vadd.f32 %v1130, %v1133
        %vm1135 = vweird.f32 %v1108
        %vm1136 = vweird.f32 %v1130
        %vm1137 = vmor %vm1135, %vm1136
        %v1138 = vsel %vm1137, %v1130, %v1134
        %v1139 = vand.u32 2147483647, %v1108
        %vm1140 = vcmp.eq.f32.partialorder %v1139, 8.507059e+37
        %v1141 = vand.u32 %v1108, 2147483648
        %v1142 = vor.u32 1.1754944e-38, %v1141
        %v1143 = vsel %vm1140, %v1142, %v1138
        %v1144 = vmul.f32 %v1098, %v1143
        %v1145 = vrcp.pop %v1111
        %v1146 = vmul.f32 %v1111, %v1145
        %v1147 = vsub.f32 1.0, %v1146
        %v1148 = vmul.f32 %v1145, %v1147
        %v1149 = vadd.f32 %v1145, %v1148
        %vm1150 = vweird.f32 %v1111
        %vm1151 = vweird.f32 %v1145
        %vm1152 = vmor %vm1150, %vm1151
        %v1153 = vsel %vm1152, %v1145, %v1149
        %v1154 = vand.u32 2147483647, %v1111
        %vm1155 = vcmp.eq.f32.partialorder %v1154, 8.507059e+37
        %v1156 = vand.u32 %v1111, 2147483648
        %v1157 = vor.u32 1.1754944e-38, %v1156
        %v1158 = vsel %vm1155, %v1157, %v1153
        %v1159 = vmul.f32 %v1100, %v1158
        %v1160 = vrcp.pop %v1114
        %v1161 = vmul.f32 %v1114, %v1160
        %v1162 = vsub.f32 1.0, %v1161
        %v1163 = vmul.f32 %v1160, %v1162
        %v1164 = vadd.f32 %v1160, %v1163
        %vm1165 = vweird.f32 %v1114
        %vm1166 = vweird.f32 %v1160
        %vm1167 = vmor %vm1165, %vm1166
        %v1168 = vsel %vm1167, %v1160, %v1164
        %v1169 = vand.u32 2147483647, %v1114
        %vm1170 = vcmp.eq.f32.partialorder %v1169, 8.507059e+37
        %v1171 = vand.u32 %v1114, 2147483648
        %v1172 = vor.u32 1.1754944e-38, %v1171
        %v1173 = vsel %vm1170, %v1172, %v1168
        %v1174 = vmul.f32 %v1102, %v1173
        %v1176 = vsel %vm1078, %v1129, 0
        %1178 = vmatpush.msra.mxu0 0.0
        %1179 = vmatpush.msra.mxu0 0.0
        %1180 = vmatpush.msra.mxu0 0.0
        %1181 = vmatpush.msra.mxu0 0.0
        %1182 = vmatpush.msra.mxu0 0.0
        %1183 = vmatpush.msra.mxu0 0.0
        %1184 = vmatpush.msra.mxu0 0.0
        %1185 = vmatpush.msra.mxu0 0.0
        %1186 = vmatpush.msra.mxu0 0.0
        %1187 = vmatpush.msra.mxu0 0.0
        %1188 = vmatpush.msra.mxu0 0.0
        %1189 = vmatpush.msra.mxu0 0.0
        %1190 = vmatpush.msra.mxu0 0.0
        %1191 = vmatpush.msra.mxu0 0.0
        %1192 = vmatpush.msra.mxu0 0.0
        %1193 = vmatpush.msra.mxu0 %v955
        %1194 = vmatmul.f32.gmra.mxu0 %v1176
        %v1195 = vpop.f32.mrf.mxu0
        %v1196 = vadd.f32 0.0, %v1195
        %1197 = vdwg.mxu0
        %v1199 = vsel %vm1078, %v1144, 0
        %1201 = vmatpush.msra.mxu0 0.0
        %1202 = vmatpush.msra.mxu0 0.0
        %1203 = vmatpush.msra.mxu0 0.0
        %1204 = vmatpush.msra.mxu0 0.0
        %1205 = vmatpush.msra.mxu0 0.0
        %1206 = vmatpush.msra.mxu0 0.0
        %1207 = vmatpush.msra.mxu0 0.0
        %1208 = vmatpush.msra.mxu0 0.0
        %1209 = vmatpush.msra.mxu0 0.0
        %1210 = vmatpush.msra.mxu0 0.0
        %1211 = vmatpush.msra.mxu0 0.0
        %1212 = vmatpush.msra.mxu0 0.0
        %1213 = vmatpush.msra.mxu0 0.0
        %1214 = vmatpush.msra.mxu0 0.0
        %1215 = vmatpush.msra.mxu0 0.0
        %1216 = vmatpush.msra.mxu0 %v959
        %1217 = vmatmul.f32.gmra.mxu0 %v1199
        %v1218 = vpop.f32.mrf.mxu0
        %v1219 = vadd.f32 0.0, %v1218
        %1220 = vdwg.mxu0
        %v1222 = vsel %vm1078, %v1159, 0
        %1224 = vmatpush.msra.mxu0 0.0
        %1225 = vmatpush.msra.mxu0 0.0
        %1226 = vmatpush.msra.mxu0 0.0
        %1227 = vmatpush.msra.mxu0 0.0
        %1228 = vmatpush.msra.mxu0 0.0
        %1229 = vmatpush.msra.mxu0 0.0
        %1230 = vmatpush.msra.mxu0 0.0
        %1231 = vmatpush.msra.mxu0 0.0
        %1232 = vmatpush.msra.mxu0 0.0
        %1233 = vmatpush.msra.mxu0 0.0
        %1234 = vmatpush.msra.mxu0 0.0
        %1235 = vmatpush.msra.mxu0 0.0
        %1236 = vmatpush.msra.mxu0 0.0
        %1237 = vmatpush.msra.mxu0 0.0
        %1238 = vmatpush.msra.mxu0 0.0
        %1239 = vmatpush.msra.mxu0 %v963
        %1240 = vmatmul.f32.gmra.mxu0 %v1222
        %v1241 = vpop.f32.mrf.mxu0
        %v1242 = vadd.f32 0.0, %v1241
        %1243 = vdwg.mxu0
        %v1245 = vsel %vm1078, %v1174, 0
        %1247 = vmatpush.msra.mxu0 0.0
        %1248 = vmatpush.msra.mxu0 0.0
        %1249 = vmatpush.msra.mxu0 0.0
        %1250 = vmatpush.msra.mxu0 0.0
        %1251 = vmatpush.msra.mxu0 0.0
        %1252 = vmatpush.msra.mxu0 0.0
        %1253 = vmatpush.msra.mxu0 0.0
        %1254 = vmatpush.msra.mxu0 0.0
        %1255 = vmatpush.msra.mxu0 0.0
        %1256 = vmatpush.msra.mxu0 0.0
        %1257 = vmatpush.msra.mxu0 0.0
        %1258 = vmatpush.msra.mxu0 0.0
        %1259 = vmatpush.msra.mxu0 0.0
        %1260 = vmatpush.msra.mxu0 0.0
        %1261 = vmatpush.msra.mxu0 0.0
        %1262 = vmatpush.msra.mxu0 %v967
        %1263 = vmatmul.f32.gmra.mxu0 %v1245
        %v1264 = vpop.f32.mrf.mxu0
        %v1265 = vadd.f32 0.0, %v1264
        %1266 = vdwg.mxu0
        %1267 = vrot.lane.b32.xlu0 %v953, 112
        %v1268 = vpop.permute.xlu0 %1267
        %1269 = vrot.lane.b32.xlu0 %v954, 112
        %v1270 = vpop.permute.xlu0 %1269
        %v1271 = vsel %vm969, %v1268, 0
        %v1273 = vsel %vm969, %v1270, 0
        %1275 = vmatpush.xpose.msra.mxu0 0.0
        %1276 = vmatpush.xpose.msra.mxu0 0.0
        %1277 = vmatpush.xpose.msra.mxu0 0.0
        %1278 = vmatpush.xpose.msra.mxu0 0.0
        %1279 = vmatpush.xpose.msra.mxu0 0.0
        %1280 = vmatpush.xpose.msra.mxu0 0.0
        %1281 = vmatpush.xpose.msra.mxu0 0.0
        %1282 = vmatpush.xpose.msra.mxu0 0.0
        %1283 = vmatpush.xpose.msra.mxu0 0.0
        %1284 = vmatpush.xpose.msra.mxu0 0.0
        %1285 = vmatpush.xpose.msra.mxu0 0.0
        %1286 = vmatpush.xpose.msra.mxu0 0.0
        %1287 = vmatpush.xpose.msra.mxu0 0.0
        %1288 = vmatpush.xpose.msra.mxu0 0.0
        %1289 = vmatpush.xpose.msra.mxu0 0.0
        %1290 = vmatpush.xpose.msra.mxu0 %v1273
        %1291 = vmatmul.f32.gmra.mxu0 %v1271
        %v1292 = vpop.f32.mrf.mxu0
        %v1293 = vadd.f32 0.0, %v1292
        %1294 = vdwg.mxu0
        %1295 = vrot.lane.b32.xlu0 %v957, 112
        %v1296 = vpop.permute.xlu0 %1295
        %1297 = vrot.lane.b32.xlu0 %v958, 112
        %v1298 = vpop.permute.xlu0 %1297
        %v1299 = vsel %vm969, %v1296, 0
        %v1301 = vsel %vm969, %v1298, 0
        %1303 = vmatpush.xpose.msra.mxu0 0.0
        %1304 = vmatpush.xpose.msra.mxu0 0.0
        %1305 = vmatpush.xpose.msra.mxu0 0.0
        %1306 = vmatpush.xpose.msra.mxu0 0.0
        %1307 = vmatpush.xpose.msra.mxu0 0.0
        %1308 = vmatpush.xpose.msra.mxu0 0.0
        %1309 = vmatpush.xpose.msra.mxu0 0.0
        %1310 = vmatpush.xpose.msra.mxu0 0.0
        %1311 = vmatpush.xpose.msra.mxu0 0.0
        %1312 = vmatpush.xpose.msra.mxu0 0.0
        %1313 = vmatpush.xpose.msra.mxu0 0.0
        %1314 = vmatpush.xpose.msra.mxu0 0.0
        %1315 = vmatpush.xpose.msra.mxu0 0.0
        %1316 = vmatpush.xpose.msra.mxu0 0.0
        %1317 = vmatpush.xpose.msra.mxu0 0.0
        %1318 = vmatpush.xpose.msra.mxu0 %v1301
        %1319 = vmatmul.f32.gmra.mxu0 %v1299
        %v1320 = vpop.f32.mrf.mxu0
        %v1321 = vadd.f32 0.0, %v1320
        %1322 = vdwg.mxu0
        %1323 = vrot.lane.b32.xlu0 %v961, 112
        %v1324 = vpop.permute.xlu0 %1323
        %1325 = vrot.lane.b32.xlu0 %v962, 112
        %v1326 = vpop.permute.xlu0 %1325
        %v1327 = vsel %vm969, %v1324, 0
        %v1329 = vsel %vm969, %v1326, 0
        %1331 = vmatpush.xpose.msra.mxu0 0.0
        %1332 = vmatpush.xpose.msra.mxu0 0.0
        %1333 = vmatpush.xpose.msra.mxu0 0.0
        %1334 = vmatpush.xpose.msra.mxu0 0.0
        %1335 = vmatpush.xpose.msra.mxu0 0.0
        %1336 = vmatpush.xpose.msra.mxu0 0.0
        %1337 = vmatpush.xpose.msra.mxu0 0.0
        %1338 = vmatpush.xpose.msra.mxu0 0.0
        %1339 = vmatpush.xpose.msra.mxu0 0.0
        %1340 = vmatpush.xpose.msra.mxu0 0.0
        %1341 = vmatpush.xpose.msra.mxu0 0.0
        %1342 = vmatpush.xpose.msra.mxu0 0.0
        %1343 = vmatpush.xpose.msra.mxu0 0.0
        %1344 = vmatpush.xpose.msra.mxu0 0.0
        %1345 = vmatpush.xpose.msra.mxu0 0.0
        %1346 = vmatpush.xpose.msra.mxu0 %v1329
        %1347 = vmatmul.f32.gmra.mxu0 %v1327
        %v1348 = vpop.f32.mrf.mxu0
        %v1349 = vadd.f32 0.0, %v1348
        %1350 = vdwg.mxu0
        %1351 = vrot.lane.b32.xlu0 %v965, 112
        %v1352 = vpop.permute.xlu0 %1351
        %1353 = vrot.lane.b32.xlu0 %v966, 112
        %v1354 = vpop.permute.xlu0 %1353
        %v1355 = vsel %vm969, %v1352, 0
        %v1357 = vsel %vm969, %v1354, 0
        %1359 = vmatpush.xpose.msra.mxu0 0.0
        %1360 = vmatpush.xpose.msra.mxu0 0.0
        %1361 = vmatpush.xpose.msra.mxu0 0.0
        %1362 = vmatpush.xpose.msra.mxu0 0.0
        %1363 = vmatpush.xpose.msra.mxu0 0.0
        %1364 = vmatpush.xpose.msra.mxu0 0.0
        %1365 = vmatpush.xpose.msra.mxu0 0.0
        %1366 = vmatpush.xpose.msra.mxu0 0.0
        %1367 = vmatpush.xpose.msra.mxu0 0.0
        %1368 = vmatpush.xpose.msra.mxu0 0.0
        %1369 = vmatpush.xpose.msra.mxu0 0.0
        %1370 = vmatpush.xpose.msra.mxu0 0.0
        %1371 = vmatpush.xpose.msra.mxu0 0.0
        %1372 = vmatpush.xpose.msra.mxu0 0.0
        %1373 = vmatpush.xpose.msra.mxu0 0.0
        %1374 = vmatpush.xpose.msra.mxu0 %v1357
        %1375 = vmatmul.f32.gmra.mxu0 %v1355
        %v1376 = vpop.f32.mrf.mxu0
        %v1377 = vadd.f32 0.0, %v1376
        %1378 = vdwg.mxu0
        %v1379 = vmul.f32 %v1293, %v524
        %v1380 = vmul.f32 %v1321, %v525
        %v1381 = vmul.f32 %v1349, %v526
        %v1382 = vmul.f32 %v1377, %v527
        %v1383 = vsel %vm1078, %v1379, -inf
        %1384 = vmax.xlane.f32.xlu0 %v1383
        %v1385 = vpop.xlane.xlu0 %1384
        %v1386 = vsel %vm1078, %v1380, -inf
        %1387 = vmax.xlane.f32.xlu0 %v1386
        %v1388 = vpop.xlane.xlu0 %1387
        %v1389 = vsel %vm1078, %v1381, -inf
        %1390 = vmax.xlane.f32.xlu0 %v1389
        %v1391 = vpop.xlane.xlu0 %1390
        %v1392 = vsel %vm1078, %v1382, -inf
        %1393 = vmax.xlane.f32.xlu0 %v1392
        %v1394 = vpop.xlane.xlu0 %1393
        %v1395 = vsub.f32 %v1379, %v1385
        %v1396 = vsub.f32 %v1380, %v1388
        %v1397 = vsub.f32 %v1381, %v1391
        %v1398 = vsub.f32 %v1382, %v1394
        %v1399 = vmul.f32 %v1395, 1.442695
        %v1400 = vpow.pop %v1399
        %v1401 = vmul.f32 %v1396, 1.442695
        %v1402 = vpow.pop %v1401
        %v1403 = vmul.f32 %v1397, 1.442695
        %v1404 = vpow.pop %v1403
        %v1405 = vmul.f32 %v1398, 1.442695
        %v1406 = vpow.pop %v1405
        %v1407 = vsel %vm1078, %v1400, 0.0
        %1408 = vadd.xlane.f32.xlu0 %v1407
        %v1409 = vpop.xlane.xlu0 %1408
        %v1410 = vsel %vm1078, %v1402, 0.0
        %1411 = vadd.xlane.f32.xlu0 %v1410
        %v1412 = vpop.xlane.xlu0 %1411
        %v1413 = vsel %vm1078, %v1404, 0.0
        %1414 = vadd.xlane.f32.xlu0 %v1413
        %v1415 = vpop.xlane.xlu0 %1414
        %v1416 = vsel %vm1078, %v1406, 0.0
        %1417 = vadd.xlane.f32.xlu0 %v1416
        %v1418 = vpop.xlane.xlu0 %1417
        %v1419 = vrcp.pop %v1409
        %v1420 = vmul.f32 %v1409, %v1419
        %v1421 = vsub.f32 1.0, %v1420
        %v1422 = vmul.f32 %v1419, %v1421
        %v1423 = vadd.f32 %v1419, %v1422
        %vm1424 = vweird.f32 %v1409
        %vm1425 = vweird.f32 %v1419
        %vm1426 = vmor %vm1424, %vm1425
        %v1427 = vsel %vm1426, %v1419, %v1423
        %v1428 = vand.u32 2147483647, %v1409
        %vm1429 = vcmp.eq.f32.partialorder %v1428, 8.507059e+37
        %v1430 = vand.u32 %v1409, 2147483648
        %v1431 = vor.u32 1.1754944e-38, %v1430
        %v1432 = vsel %vm1429, %v1431, %v1427
        %v1433 = vmul.f32 %v1400, %v1432
        %v1434 = vrcp.pop %v1412
        %v1435 = vmul.f32 %v1412, %v1434
        %v1436 = vsub.f32 1.0, %v1435
        %v1437 = vmul.f32 %v1434, %v1436
        %v1438 = vadd.f32 %v1434, %v1437
        %vm1439 = vweird.f32 %v1412
        %vm1440 = vweird.f32 %v1434
        %vm1441 = vmor %vm1439, %vm1440
        %v1442 = vsel %vm1441, %v1434, %v1438
        %v1443 = vand.u32 2147483647, %v1412
        %vm1444 = vcmp.eq.f32.partialorder %v1443, 8.507059e+37
        %v1445 = vand.u32 %v1412, 2147483648
        %v1446 = vor.u32 1.1754944e-38, %v1445
        %v1447 = vsel %vm1444, %v1446, %v1442
        %v1448 = vmul.f32 %v1402, %v1447
        %v1449 = vrcp.pop %v1415
        %v1450 = vmul.f32 %v1415, %v1449
        %v1451 = vsub.f32 1.0, %v1450
        %v1452 = vmul.f32 %v1449, %v1451
        %v1453 = vadd.f32 %v1449, %v1452
        %vm1454 = vweird.f32 %v1415
        %vm1455 = vweird.f32 %v1449
        %vm1456 = vmor %vm1454, %vm1455
        %v1457 = vsel %vm1456, %v1449, %v1453
        %v1458 = vand.u32 2147483647, %v1415
        %vm1459 = vcmp.eq.f32.partialorder %v1458, 8.507059e+37
        %v1460 = vand.u32 %v1415, 2147483648
        %v1461 = vor.u32 1.1754944e-38, %v1460
        %v1462 = vsel %vm1459, %v1461, %v1457
        %v1463 = vmul.f32 %v1404, %v1462
        %v1464 = vrcp.pop %v1418
        %v1465 = vmul.f32 %v1418, %v1464
        %v1466 = vsub.f32 1.0, %v1465
        %v1467 = vmul.f32 %v1464, %v1466
        %v1468 = vadd.f32 %v1464, %v1467
        %vm1469 = vweird.f32 %v1418
        %vm1470 = vweird.f32 %v1464
        %vm1471 = vmor %vm1469, %vm1470
        %v1472 = vsel %vm1471, %v1464, %v1468
        %v1473 = vand.u32 2147483647, %v1418
        %vm1474 = vcmp.eq.f32.partialorder %v1473, 8.507059e+37
        %v1475 = vand.u32 %v1418, 2147483648
        %v1476 = vor.u32 1.1754944e-38, %v1475
        %v1477 = vsel %vm1474, %v1476, %v1472
        %v1478 = vmul.f32 %v1406, %v1477
        %1480 = vrot.lane.b32.xlu0 %v955, 112
        %v1481 = vpop.permute.xlu0 %1480
        %v1484 = vsel %vm1078, %v1433, 0
        %1486 = vmatpush.msra.mxu0 0.0
        %1487 = vmatpush.msra.mxu0 0.0
        %1488 = vmatpush.msra.mxu0 0.0
        %1489 = vmatpush.msra.mxu0 0.0
        %1490 = vmatpush.msra.mxu0 0.0
        %1491 = vmatpush.msra.mxu0 0.0
        %1492 = vmatpush.msra.mxu0 0.0
        %1493 = vmatpush.msra.mxu0 0.0
        %1494 = vmatpush.msra.mxu0 0.0
        %1495 = vmatpush.msra.mxu0 0.0
        %1496 = vmatpush.msra.mxu0 0.0
        %1497 = vmatpush.msra.mxu0 0.0
        %1498 = vmatpush.msra.mxu0 0.0
        %1499 = vmatpush.msra.mxu0 0.0
        %1500 = vmatpush.msra.mxu0 0.0
        %1501 = vmatpush.msra.mxu0 %v1481
        %1502 = vmatmul.f32.gmra.mxu0 %v1484
        %v1503 = vpop.f32.mrf.mxu0
        %v1504 = vadd.f32 0.0, %v1503
        %1505 = vdwg.mxu0
        %1507 = vrot.lane.b32.xlu0 %v959, 112
        %v1508 = vpop.permute.xlu0 %1507
        %v1511 = vsel %vm1078, %v1448, 0
        %1513 = vmatpush.msra.mxu0 0.0
        %1514 = vmatpush.msra.mxu0 0.0
        %1515 = vmatpush.msra.mxu0 0.0
        %1516 = vmatpush.msra.mxu0 0.0
        %1517 = vmatpush.msra.mxu0 0.0
        %1518 = vmatpush.msra.mxu0 0.0
        %1519 = vmatpush.msra.mxu0 0.0
        %1520 = vmatpush.msra.mxu0 0.0
        %1521 = vmatpush.msra.mxu0 0.0
        %1522 = vmatpush.msra.mxu0 0.0
        %1523 = vmatpush.msra.mxu0 0.0
        %1524 = vmatpush.msra.mxu0 0.0
        %1525 = vmatpush.msra.mxu0 0.0
        %1526 = vmatpush.msra.mxu0 0.0
        %1527 = vmatpush.msra.mxu0 0.0
        %1528 = vmatpush.msra.mxu0 %v1508
        %1529 = vmatmul.f32.gmra.mxu0 %v1511
        %v1530 = vpop.f32.mrf.mxu0
        %v1531 = vadd.f32 0.0, %v1530
        %1532 = vdwg.mxu0
        %1534 = vrot.lane.b32.xlu0 %v963, 112
        %v1535 = vpop.permute.xlu0 %1534
        %v1538 = vsel %vm1078, %v1463, 0
        %1540 = vmatpush.msra.mxu0 0.0
        %1541 = vmatpush.msra.mxu0 0.0
        %1542 = vmatpush.msra.mxu0 0.0
        %1543 = vmatpush.msra.mxu0 0.0
        %1544 = vmatpush.msra.mxu0 0.0
        %1545 = vmatpush.msra.mxu0 0.0
        %1546 = vmatpush.msra.mxu0 0.0
        %1547 = vmatpush.msra.mxu0 0.0
        %1548 = vmatpush.msra.mxu0 0.0
        %1549 = vmatpush.msra.mxu0 0.0
        %1550 = vmatpush.msra.mxu0 0.0
        %1551 = vmatpush.msra.mxu0 0.0
        %1552 = vmatpush.msra.mxu0 0.0
        %1553 = vmatpush.msra.mxu0 0.0
        %1554 = vmatpush.msra.mxu0 0.0
        %1555 = vmatpush.msra.mxu0 %v1535
        %1556 = vmatmul.f32.gmra.mxu0 %v1538
        %v1557 = vpop.f32.mrf.mxu0
        %v1558 = vadd.f32 0.0, %v1557
        %1559 = vdwg.mxu0
        %1561 = vrot.lane.b32.xlu0 %v967, 112
        %v1562 = vpop.permute.xlu0 %1561
        %v1565 = vsel %vm1078, %v1478, 0
        %1567 = vmatpush.msra.mxu0 0.0
        %1568 = vmatpush.msra.mxu0 0.0
        %1569 = vmatpush.msra.mxu0 0.0
        %1570 = vmatpush.msra.mxu0 0.0
        %1571 = vmatpush.msra.mxu0 0.0
        %1572 = vmatpush.msra.mxu0 0.0
        %1573 = vmatpush.msra.mxu0 0.0
        %1574 = vmatpush.msra.mxu0 0.0
        %1575 = vmatpush.msra.mxu0 0.0
        %1576 = vmatpush.msra.mxu0 0.0
        %1577 = vmatpush.msra.mxu0 0.0
        %1578 = vmatpush.msra.mxu0 0.0
        %1579 = vmatpush.msra.mxu0 0.0
        %1580 = vmatpush.msra.mxu0 0.0
        %1581 = vmatpush.msra.mxu0 0.0
        %1582 = vmatpush.msra.mxu0 %v1562
        %1583 = vmatmul.f32.gmra.mxu0 %v1565
        %v1584 = vpop.f32.mrf.mxu0
        %v1585 = vadd.f32 0.0, %v1584
        %1586 = vdwg.mxu0
        %1591 = vrot.lane.b32.xlu0 %v1504, 16
        %v1592 = vpop.permute.xlu0 %1591
        %1593 = vrot.lane.b32.xlu0 %v1531, 16
        %v1594 = vpop.permute.xlu0 %1593
        %1595 = vrot.lane.b32.xlu0 %v1558, 16
        %v1596 = vpop.permute.xlu0 %1595
        %1597 = vrot.lane.b32.xlu0 %v1585, 16
        %v1598 = vpop.permute.xlu0 %1597
        %v1603 = vsel %vm969, %v1196, %v1592
        %v1604 = vsel %vm969, %v1219, %v1594
        %v1605 = vsel %vm969, %v1242, %v1596
        %v1606 = vsel %vm969, %v1265, %v1598
        %vm1607 = vcmask 261120
        %v1608 = vsel %vm1607, %v1603, 0.0
        %v1609 = vsel %vm1607, %v1604, 0.0
        %v1610 = vsel %vm1607, %v1605, 0.0
        %v1611 = vsel %vm1607, %v1606, 0.0
        %v1612 = vadd.f32 %v1608, %v520
        %v1613 = vadd.f32 %v1609, %v521
        %v1614 = vadd.f32 %v1610, %v522
        %v1615 = vadd.f32 %v1611, %v523
        %1616 = vadd.xlane.f32.xlu0 %v1612
        %v1617 = vpop.xlane.xlu0 %1616
        %1618 = vadd.xlane.f32.xlu0 %v1613
        %v1619 = vpop.xlane.xlu0 %1618
        %1620 = vadd.xlane.f32.xlu0 %v1614
        %v1621 = vpop.xlane.xlu0 %1620
        %1622 = vadd.xlane.f32.xlu0 %v1615
        %v1623 = vpop.xlane.xlu0 %1622
        %v1624 = vmul.f32 %v1617, 0.03125
        %v1625 = vmul.f32 %v1619, 0.03125
        %v1626 = vmul.f32 %v1621, 0.03125
        %v1627 = vmul.f32 %v1623, 0.03125
        %v1628 = vsub.f32 %v1612, %v1624
        %v1629 = vsub.f32 %v1613, %v1625
        %v1630 = vsub.f32 %v1614, %v1626
        %v1631 = vsub.f32 %v1615, %v1627
        %v1632 = vmul.f32 %v1628, %v1628
        %v1633 = vmul.f32 %v1629, %v1629
        %v1634 = vmul.f32 %v1630, %v1630
        %v1635 = vmul.f32 %v1631, %v1631
        %v1636 = vmul.f32 %v1632, %v407
        %v1637 = vmul.f32 %v1633, %v407
        %v1638 = vmul.f32 %v1634, %v407
        %v1639 = vmul.f32 %v1635, %v407
        %1640 = vadd.xlane.f32.xlu0 %v1636
        %v1641 = vpop.xlane.xlu0 %1640
        %1642 = vadd.xlane.f32.xlu0 %v1637
        %v1643 = vpop.xlane.xlu0 %1642
        %1644 = vadd.xlane.f32.xlu0 %v1638
        %v1645 = vpop.xlane.xlu0 %1644
        %1646 = vadd.xlane.f32.xlu0 %v1639
        %v1647 = vpop.xlane.xlu0 %1646
        %v1648 = vmul.f32 %v1641, 0.03125
        %v1649 = vmul.f32 %v1643, 0.03125
        %v1650 = vmul.f32 %v1645, 0.03125
        %v1651 = vmul.f32 %v1647, 0.03125
        %v1652 = vadd.f32 %v1648, 1e-05
        %v1653 = vadd.f32 %v1649, 1e-05
        %v1654 = vadd.f32 %v1650, 1e-05
        %v1655 = vadd.f32 %v1651, 1e-05
        %v1656 = vrsqrt.pop %v1652
        %v1657 = vmul.f32 %v1656, %v1652
        %v1658 = vmul.f32 %v1657, %v1656
        %v1659 = vmul.f32 0.5, %v1658
        %v1660 = vsub.f32 1.5, %v1659
        %v1661 = vmul.f32 %v1656, %v1660
        %vm1662 = vweird.f32 %v1652
        %vm1663 = vweird.f32 %v1656
        %vm1664 = vmor %vm1662, %vm1663
        %v1665 = vsel %vm1664, %v1656, %v1661
        %v1666 = vrsqrt.pop %v1653
        %v1667 = vmul.f32 %v1666, %v1653
        %v1668 = vmul.f32 %v1667, %v1666
        %v1669 = vmul.f32 0.5, %v1668
        %v1670 = vsub.f32 1.5, %v1669
        %v1671 = vmul.f32 %v1666, %v1670
        %vm1672 = vweird.f32 %v1653
        %vm1673 = vweird.f32 %v1666
        %vm1674 = vmor %vm1672, %vm1673
        %v1675 = vsel %vm1674, %v1666, %v1671
        %v1676 = vrsqrt.pop %v1654
        %v1677 = vmul.f32 %v1676, %v1654
        %v1678 = vmul.f32 %v1677, %v1676
        %v1679 = vmul.f32 0.5, %v1678
        %v1680 = vsub.f32 1.5, %v1679
        %v1681 = vmul.f32 %v1676, %v1680
        %vm1682 = vweird.f32 %v1654
        %vm1683 = vweird.f32 %v1676
        %vm1684 = vmor %vm1682, %vm1683
        %v1685 = vsel %vm1684, %v1676, %v1681
        %v1686 = vrsqrt.pop %v1655
        %v1687 = vmul.f32 %v1686, %v1655
        %v1688 = vmul.f32 %v1687, %v1686
        %v1689 = vmul.f32 0.5, %v1688
        %v1690 = vsub.f32 1.5, %v1689
        %v1691 = vmul.f32 %v1686, %v1690
        %vm1692 = vweird.f32 %v1655
        %vm1693 = vweird.f32 %v1686
        %vm1694 = vmor %vm1692, %vm1693
        %v1695 = vsel %vm1694, %v1686, %v1691
        %v1696 = vmul.f32 %v1628, %v1665
        %v1697 = vmul.f32 %v1629, %v1675
        %v1698 = vmul.f32 %v1630, %v1685
        %v1699 = vmul.f32 %v1631, %v1695
        %v1700 = vperm.slane %v610, 0
        %v1701 = vmul.f32 %v1696, %v1700
        %v1702 = vmul.f32 %v1697, %v1700
        %v1703 = vmul.f32 %v1698, %v1700
        %v1704 = vmul.f32 %v1699, %v1700
        %v1705 = vperm.slane %v610, 1
        %v1706 = vadd.f32 %v1701, %v1705
        %v1707 = vadd.f32 %v1702, %v1705
        %v1708 = vadd.f32 %v1703, %v1705
        %v1709 = vadd.f32 %v1704, %v1705
        %v1710 = vmul.f32 %v1706, %v407
        %v1711 = vmul.f32 %v1707, %v407
        %v1712 = vmul.f32 %v1708, %v407
        %v1713 = vmul.f32 %v1709, %v407
        %1714 = vmatpush.msra.mxu0 %v607
        %1715 = vmatpush.msra.mxu0 %v602
        %1716 = vmatpush.msra.mxu0 %v597
        %1717 = vmatpush.msra.mxu0 %v592
        %1718 = vmatpush.msra.mxu0 %v587
        %1719 = vmatpush.msra.mxu0 %v582
        %1720 = vmatpush.msra.mxu0 %v577
        %1721 = vmatpush.msra.mxu0 %v572
        %1722 = vmatpush.msra.mxu0 %v567
        %1723 = vmatpush.msra.mxu0 %v562
        %1724 = vmatpush.msra.mxu0 %v557
        %1725 = vmatpush.msra.mxu0 %v552
        %1726 = vmatpush.msra.mxu0 %v547
        %1727 = vmatpush.msra.mxu0 %v542
        %1728 = vmatpush.msra.mxu0 %v537
        %1729 = vmatpush.msra.mxu0 %v532
        %1730 = vmatmul.f32.gmra.mxu0 %v1710
        %v1731 = vpop.f32.mrf.mxu0
        %v1732 = vadd.f32 0.0, %v1731
        %1733 = vmatmul.f32.gmra.mxu0 %v1711
        %v1734 = vpop.f32.mrf.mxu0
        %v1735 = vadd.f32 0.0, %v1734
        %1736 = vmatmul.f32.gmra.mxu0 %v1712
        %v1737 = vpop.f32.mrf.mxu0
        %v1738 = vadd.f32 0.0, %v1737
        %1739 = vmatmul.f32.gmra.mxu0 %v1713
        %v1740 = vpop.f32.mrf.mxu0
        %v1741 = vadd.f32 0.0, %v1740
        %1742 = vdwg.mxu0
        %v1743 = vadd.f32 %v1732, %v1735
        %v1744 = vadd.f32 %v1743, %v1738
        %v1745 = vadd.f32 %v1744, %v1741
        %v1746 = vrot.slane %v1745, 4
        %v1747 = vadd.f32 %v1745, %v1746
        %v1748 = vrot.slane %v1747, 2
        %v1749 = vadd.f32 %v1747, %v1748
        %v1750 = vrot.slane %v1749, 1
        %v1751 = vadd.f32 %v1749, %v1750
        %v1752 = vmul.f32 %v1751, 0.03125
        %v1753 = vmul.f32 %v1732, %v1732
        %v1754 = vmul.f32 %v1735, %v1735
        %v1755 = vmul.f32 %v1738, %v1738
        %v1756 = vmul.f32 %v1741, %v1741
        %v1757 = vadd.f32 %v1753, %v1754
        %v1758 = vadd.f32 %v1757, %v1755
        %v1759 = vadd.f32 %v1758, %v1756
        %v1760 = vrot.slane %v1759, 4
        %v1761 = vadd.f32 %v1759, %v1760
        %v1762 = vrot.slane %v1761, 2
        %v1763 = vadd.f32 %v1761, %v1762
        %v1764 = vrot.slane %v1763, 1
        %v1765 = vadd.f32 %v1763, %v1764
        %v1766 = vmul.f32 %v1765, 0.03125
        %v1767 = vmul.f32 %v1752, %v1752
        %v1768 = vsub.f32 %v1766, %v1767
        %v1769 = vmax.f32 %v1768, 0.0
        %v1770 = vadd.f32 %v1769, 1e-05
        %v1771 = vrsqrt.pop %v1770
        %v1772 = vmul.f32 %v1771, %v1770
        %v1773 = vmul.f32 %v1772, %v1771
        %v1774 = vmul.f32 0.5, %v1773
        %v1775 = vsub.f32 1.5, %v1774
        %v1776 = vmul.f32 %v1771, %v1775
        %vm1777 = vweird.f32 %v1770
        %vm1778 = vweird.f32 %v1771
        %vm1779 = vmor %vm1777, %vm1778
        %v1780 = vsel %vm1779, %v1771, %v1776
        %v1781 = vmul.f32 %v609, %v1780
        %v1782 = vmul.f32 %v1752, %v1781
        %v1784 = vrot.slane %v1782, 7
        %v1786 = vsub.f32 %v609, %v1784
        %v1787 = vperm.slane %v1781, 0
        %v1788 = vmul.f32 %v1732, %v1787
        %v1789 = vmul.f32 %v1735, %v1787
        %v1790 = vmul.f32 %v1738, %v1787
        %v1791 = vmul.f32 %v1741, %v1787
        %v1792 = vperm.slane %v1786, 1
        %v1793 = vadd.f32 %v1788, %v1792
        %v1794 = vadd.f32 %v1789, %v1792
        %v1795 = vadd.f32 %v1790, %v1792
        %v1796 = vadd.f32 %v1791, %v1792
        %v1797 = vadd.f32 %v1710, %v1793
        %v1798 = vadd.f32 %v1711, %v1794
        %v1799 = vadd.f32 %v1712, %v1795
        %v1800 = vadd.f32 %v1713, %v1796
        %1801 = vadd.xlane.f32.xlu0 %v1797
        %v1802 = vpop.xlane.xlu0 %1801
        %1803 = vadd.xlane.f32.xlu0 %v1798
        %v1804 = vpop.xlane.xlu0 %1803
        %1805 = vadd.xlane.f32.xlu0 %v1799
        %v1806 = vpop.xlane.xlu0 %1805
        %1807 = vadd.xlane.f32.xlu0 %v1800
        %v1808 = vpop.xlane.xlu0 %1807
        %v1809 = vmul.f32 %v1802, 0.03125
        %v1810 = vmul.f32 %v1804, 0.03125
        %v1811 = vmul.f32 %v1806, 0.03125
        %v1812 = vmul.f32 %v1808, 0.03125
        %v1813 = vsub.f32 %v1797, %v1809
        %v1814 = vsub.f32 %v1798, %v1810
        %v1815 = vsub.f32 %v1799, %v1811
        %v1816 = vsub.f32 %v1800, %v1812
        %v1817 = vmul.f32 %v1813, %v1813
        %v1818 = vmul.f32 %v1814, %v1814
        %v1819 = vmul.f32 %v1815, %v1815
        %v1820 = vmul.f32 %v1816, %v1816
        %v1821 = vmul.f32 %v1817, %v407
        %v1822 = vmul.f32 %v1818, %v407
        %v1823 = vmul.f32 %v1819, %v407
        %v1824 = vmul.f32 %v1820, %v407
        %1825 = vadd.xlane.f32.xlu0 %v1821
        %v1826 = vpop.xlane.xlu0 %1825
        %1827 = vadd.xlane.f32.xlu0 %v1822
        %v1828 = vpop.xlane.xlu0 %1827
        %1829 = vadd.xlane.f32.xlu0 %v1823
        %v1830 = vpop.xlane.xlu0 %1829
        %1831 = vadd.xlane.f32.xlu0 %v1824
        %v1832 = vpop.xlane.xlu0 %1831
        %v1833 = vmul.f32 %v1826, 0.03125
        %v1834 = vmul.f32 %v1828, 0.03125
        %v1835 = vmul.f32 %v1830, 0.03125
        %v1836 = vmul.f32 %v1832, 0.03125
        %v1837 = vadd.f32 %v1833, 1e-05
        %v1838 = vadd.f32 %v1834, 1e-05
        %v1839 = vadd.f32 %v1835, 1e-05
        %v1840 = vadd.f32 %v1836, 1e-05
        %v1841 = vrsqrt.pop %v1837
        %v1842 = vmul.f32 %v1841, %v1837
        %v1843 = vmul.f32 %v1842, %v1841
        %v1844 = vmul.f32 0.5, %v1843
        %v1845 = vsub.f32 1.5, %v1844
        %v1846 = vmul.f32 %v1841, %v1845
        %vm1847 = vweird.f32 %v1837
        %vm1848 = vweird.f32 %v1841
        %vm1849 = vmor %vm1847, %vm1848
        %v1850 = vsel %vm1849, %v1841, %v1846
        %v1851 = vrsqrt.pop %v1838
        %v1852 = vmul.f32 %v1851, %v1838
        %v1853 = vmul.f32 %v1852, %v1851
        %v1854 = vmul.f32 0.5, %v1853
        %v1855 = vsub.f32 1.5, %v1854
        %v1856 = vmul.f32 %v1851, %v1855
        %vm1857 = vweird.f32 %v1838
        %vm1858 = vweird.f32 %v1851
        %vm1859 = vmor %vm1857, %vm1858
        %v1860 = vsel %vm1859, %v1851, %v1856
        %v1861 = vrsqrt.pop %v1839
        %v1862 = vmul.f32 %v1861, %v1839
        %v1863 = vmul.f32 %v1862, %v1861
        %v1864 = vmul.f32 0.5, %v1863
        %v1865 = vsub.f32 1.5, %v1864
        %v1866 = vmul.f32 %v1861, %v1865
        %vm1867 = vweird.f32 %v1839
        %vm1868 = vweird.f32 %v1861
        %vm1869 = vmor %vm1867, %vm1868
        %v1870 = vsel %vm1869, %v1861, %v1866
        %v1871 = vrsqrt.pop %v1840
        %v1872 = vmul.f32 %v1871, %v1840
        %v1873 = vmul.f32 %v1872, %v1871
        %v1874 = vmul.f32 0.5, %v1873
        %v1875 = vsub.f32 1.5, %v1874
        %v1876 = vmul.f32 %v1871, %v1875
        %vm1877 = vweird.f32 %v1840
        %vm1878 = vweird.f32 %v1871
        %vm1879 = vmor %vm1877, %vm1878
        %v1880 = vsel %vm1879, %v1871, %v1876
        %v1881 = vmul.f32 %v1813, %v1850
        %v1882 = vmul.f32 %v1814, %v1860
        %v1883 = vmul.f32 %v1815, %v1870
        %v1884 = vmul.f32 %v1816, %v1880
        %v1885 = vmul.f32 %v1881, %v1700
        %v1886 = vmul.f32 %v1882, %v1700
        %v1887 = vmul.f32 %v1883, %v1700
        %v1888 = vmul.f32 %v1884, %v1700
        %v1889 = vadd.f32 %v1885, %v1705
        %v1890 = vadd.f32 %v1886, %v1705
        %v1891 = vadd.f32 %v1887, %v1705
        %v1892 = vadd.f32 %v1888, %v1705
        %v1893 = vmul.f32 %v1889, %v407
        %v1894 = vmul.f32 %v1890, %v407
        %v1895 = vmul.f32 %v1891, %v407
        %v1896 = vmul.f32 %v1892, %v407
        %v1897 = vadd.f32 %v1893, %v956
        %v1898 = vadd.f32 %v1894, %v960
        %v1899 = vadd.f32 %v1895, %v964
        %v1900 = vadd.f32 %v1896, %v968
        %1901 = vst [vmem:[#allocation2] sm:$0xff] %v1897
        %1902 = vst [vmem:[#allocation2 + $0x8] sm:$0xff] %v1898
        %1903 = vst [vmem:[#allocation2 + $0x10] sm:$0xff] %v1899
        %1904 = vst [vmem:[#allocation2 + $0x18] sm:$0xff] %v1900
        %p1905 = scmp.eq.s32.totalorder %s22, 1
        // Predicated region
        $region77: #{tpu_custom_call.1} parent=47 // pred_check
          %p1906 = pneg %p1905
        $region78: #{tpu_custom_call.1} parent=47 // pred_check_branch
          %1908 = sbr.rel (%p1906) target = $region80
        $region79: #{tpu_custom_call.1} parent=47 // pred_region
          %v1913 = vrot.slane %v1898, 7
          %vm1914 = vcmask 1041409
          %v1915 = vsel %vm1914, %v1913, %v1897
          %v1916 = vrot.slane %v1899, 6
          %vm1917 = vcmask 1042434
          %v1918 = vsel %vm1917, %v1916, %v1915
          %v1919 = vrot.slane %v1900, 5
          %vm1920 = vcmask 1043459
          %v1921 = vsel %vm1920, %v1919, %v1918
          %1923 = vst [vmem:[#allocation13] sm:$0xf] %v1921
        $region80: #{tpu_custom_call.1} parent=47 // pred_fallthru
          _
        // Predicated region
        $region81: #{tpu_custom_call.1} parent=47 // pred_check
          %p1924 = pneg %p197
        $region82: #{tpu_custom_call.1} parent=47 // pred_check_branch
          %1926 = sbr.rel (%p1924) target = $region84
        $region83: #{tpu_custom_call.1} parent=47 // pred_region
          %1928 = vsyncadd [#allocation5], 0
          %s1930 = sshll.u32 [#allocation13], 4
          %s1931 = int_to_ptr.vmem [resolvable:$true] %s1930
          %s1932 = sshll.u32 %s7, 4
          %s1933 = int_to_ptr.hbm [resolvable:$true] %s1932
          %1935 = dma.vmem_to_hbm [thread:$0]  %s1931, 64, %s1933, [#allocation5]
        $region84: #{tpu_custom_call.1} parent=47 // pred_fallthru
          _
        // Predicated region
        $region85: #{tpu_custom_call.1} parent=47 // pred_check
          %p1936 = pneg %p197
        $region86: #{tpu_custom_call.1} parent=47 // pred_check_branch
          %1938 = sbr.rel (%p1936) target = $region88
        $region87: #{tpu_custom_call.1} parent=47 // pred_region
          %1940 = dma.done [#allocation5], 64
        $region88: #{tpu_custom_call.1} parent=47 // pred_fallthru
          _
      $region48: #{tpu_custom_call.1} parent=5 // pred_fallthru
        _
      %p1941 = scmp.le.s32.totalorder 2, %s17
      // Predicated region
      $region89: #{tpu_custom_call.1} parent=5 // pred_check
        %p1942 = pneg %p1941
      $region90: #{tpu_custom_call.1} parent=5 // pred_check_branch
        %1944 = sbr.rel (%p1942) target = $region92
      $region91: #{tpu_custom_call.1} parent=5 // pred_region
        %s1945 = ssub.s32 %s17, 2
      $region92: #{tpu_custom_call.1} parent=5 // pred_fallthru
        _
    $region6: #{tpu_custom_call.1} parent=1 // loop_footer
      %s21 = sadd.s32 1, %s17
    $region7: #{tpu_custom_call.1} parent=1 // loop_footer_branch
      %16 = sbr.rel target = $region3
    $region8: #{tpu_custom_call.1} parent=1 // loop_exit
      _
    %1946 = vsyncpa [#allocation4], 1
    %s1947 = scalar_lea.sflag [#allocation4], 1
    %1948 = vsyncpa %s1947, 1
    %1949 = vsyncpa [#allocation7], 1
    %1950 = vsyncpa [#allocation10], 1
    %1951 = vsyncpa [#allocation5], 1
    %s1952 = scalar_lea.sflag [#allocation5], 1
    %1953 = vsyncpa %s1952, 1

</llo_original>
